<compile_context>
chip_gen: v6e
topology: v6e:2x2x1
jax: 0.10.0
libtpu: 0.0.40
codegen_flags: <defaults>
</compile_context>

<pallas_src>
import jax
import jax.numpy as jnp
from jax.experimental import pallas as pl
from jax.experimental.pallas import tpu as pltpu


def attention_kernel(z_ref, w1_ref, b1_ref, w2_ref, o_ref):
    # z_ref : (TB, N, D)  block of TB batch elements
    # w1_ref: (D, D)      first Linear weight (in -> out layout)
    # b1_ref: (1, D)      first Linear bias
    # w2_ref: (1, D)      second Linear weight, stored as a row (no bias)
    # o_ref : (TB, D)     output rows for this block
    TB, N, D = z_ref.shape
    z = z_ref[...]                                          # (TB, N, D) f32

    # --- first Linear + tanh on the MXU -------------------------------------
    # Fold batch rows into the M dimension only when the reshape is a
    # zero-cost view (N multiple of 8); otherwise keep the matmul batched.
    if N % 8 == 0:
        h = jnp.tanh(
            jnp.dot(z.reshape(TB * N, D), w1_ref[...],
                    preferred_element_type=jnp.float32)
            + b1_ref[...]
        ).reshape(TB, N, D)                                 # (TB, N, D)
    else:
        h = jnp.tanh(
            jnp.einsum("bnd,de->bne", z, w1_ref[...],
                       preferred_element_type=jnp.float32)
            + b1_ref[...]
        )                                                   # (TB, N, D)

    # --- attention logits: VPU multiply + lane reduce (no 1-wide matmul) ----
    # Produces (TB, N) with N on lanes so the softmax runs lane-wide.
    logits = jnp.sum(h * w2_ref[...], axis=-1)              # (TB, N)

    # --- softmax over the sequence axis, lane-wide ---------------------------
    m = jnp.max(logits, axis=-1, keepdims=True)             # (TB, 1)
    e = jnp.exp(logits - m)                                  # (TB, N)
    denom = jnp.sum(e, axis=-1, keepdims=True)               # (TB, 1), >= 1

    # EUP approximate reciprocal + one Newton step (restores f32 accuracy).
    r = pl.reciprocal(denom, approx=True)
    r = r * (2.0 - denom * r)                                # (TB, 1)

    # --- weighted sum over N as a batched MXU contraction --------------------
    # 'bqn,bnd->bqd' with q=1: avoids broadcasting e over D and the
    # lane<->sublane relayout of the previous broadcast+reduce form.
    acc = jnp.einsum(
        "bqn,bnd->bqd", e.reshape(TB, 1, N), z,
        preferred_element_type=jnp.float32,
    ).reshape(TB, D)                                         # (TB, D)

    o_ref[...] = (acc * r).astype(o_ref.dtype)


def _choose_tb(B, N, D, itemsize=4, vmem_budget=40 << 20):
    """Largest batch tile TB (multiple of 8, or the full batch, dividing B)
    whose working set fits a conservative VMEM budget (safe on v7x/v6e/v5e)."""

    def bytes_needed(tb):
        z_blk = tb * N * D * itemsize          # z block
        interm = 2 * tb * N * D * 4            # h and the logits product (f32)
        wts = (D * D + 2 * D) * itemsize       # W1 + b1 + w2 row
        out_blk = tb * D * itemsize            # output block
        # double-buffer the pipelined operands (z, weights, output)
        return 2 * z_blk + interm + 2 * wts + 2 * out_blk

    divs = [d for d in range(1, B + 1) if B % d == 0]
    # (TB, D) output block: TB must be a multiple of 8 or equal the full batch
    legal = [d for d in divs if d % 8 == 0 or d == B]
    fitting = [d for d in legal if bytes_needed(d) <= vmem_budget]
    if fitting:
        return max(fitting)
    return min(legal)


def attention_forward(z, w1, b1, w2, tb=None):
    """z: (B, N, D) float32; w1: (D, D); b1: (D,); w2: (D, 1).  Returns (B, D)."""
    B, N, D = z.shape
    TB = _choose_tb(B, N, D) if tb is None else tb
    assert B % TB == 0, "batch must be divisible by the batch tile"

    b1_2d = b1.reshape(1, D)
    w2_row = w2.reshape(1, D)   # W2 as a row for the VPU mul + lane reduce

    # Explicit VMEM budget: raise above the 16/32 MiB scoped defaults but stay
    # under v7x's 64 MiB physical VMEM.
    itemsize = 4
    need = (2 * TB * N * D + 2 * TB * N * D
            + 2 * (D * D + 2 * D) + 2 * TB * D) * itemsize
    vmem_limit = int(min(max(2 * need, 32 << 20), 48 << 20))

    cost = pl.CostEstimate(
        flops=2 * B * N * D * D + 4 * B * N * D,       # matmul + logits + wsum
        transcendentals=B * N * (D + 1),               # tanh + exp
        bytes_accessed=4 * (B * N * D + D * D + 2 * D + B * D),
    )

    return pl.pallas_call(
        attention_kernel,
        out_shape=jax.ShapeDtypeStruct((B, D), z.dtype),
        grid_spec=pltpu.PrefetchScalarGridSpec(
            num_scalar_prefetch=0,
            grid=(B // TB,),
            in_specs=[
                pl.BlockSpec((TB, N, D), lambda b: (b, 0, 0)),  # z block
                pl.BlockSpec((D, D), lambda b: (0, 0)),         # W1 (full)
                pl.BlockSpec((1, D), lambda b: (0, 0)),         # b1 (full)
                pl.BlockSpec((1, D), lambda b: (0, 0)),         # W2 row (full)
            ],
            out_specs=pl.BlockSpec((TB, D), lambda b: (b, 0)),
        ),
        compiler_params=pltpu.CompilerParams(
            dimension_semantics=("parallel",),
            vmem_limit_bytes=vmem_limit,
        ),
        cost_estimate=cost,
    )(z, w1, b1_2d, w2_row)


def attention_reference(z, w1, b1, w2):
    """Pure-JAX reference mirroring the PyTorch forward."""
    h = jnp.tanh(jnp.einsum("bnd,de->bne", z, w1) + b1)   # (B, N, D)
    w = jnp.einsum("bnd,do->bno", h, w2)                  # (B, N, 1)
    beta = jax.nn.softmax(w, axis=1)                      # softmax over dim=1
    return jnp.sum(beta * z, axis=1)                      # (B, D)


if __name__ == "__main__":
    key = jax.random.PRNGKey(0)
    k_z, k_w1, k_b1, k_w2 = jax.random.split(key, 4)

    # Small shapes consistent with the module (batch, sequence, num_embed).
    B, N, D = 16, 8, 32

    # Deterministic synthetic parameters (shapes from nn.Linear in __init__):
    #   Linear(D, D): weight (D, D) stored in->out, bias (D,)
    #   Linear(D, 1, bias=False): weight (D, 1)
    z = jax.random.normal(k_z, (B, N, D), dtype=jnp.float32)
    w1 = jax.random.normal(k_w1, (D, D), dtype=jnp.float32) * (1.0 / jnp.sqrt(D))
    b1 = jax.random.normal(k_b1, (D,), dtype=jnp.float32) * 0.1
    w2 = jax.random.normal(k_w2, (D, 1), dtype=jnp.float32) * (1.0 / jnp.sqrt(D))

    out = attention_forward(z, w1, b1, w2)
    out = jax.block_until_ready(out)

    ref = attention_reference(z, w1, b1, w2)
    assert out.shape == (B, D)
    assert jnp.allclose(out, ref, atol=1e-4, rtol=1e-4), "mismatch vs reference"

    print("KERNEL_OK")
</pallas_src>

<mosaic_0001>
module attributes {stable_mosaic.version = 11 : i64} {
  func.func @attention_kernel(%arg0: i32, %arg1: memref<16x8x32xf32, #tpu.memory_space<vmem>>, %arg2: memref<32x32xf32, #tpu.memory_space<vmem>>, %arg3: memref<1x32xf32, #tpu.memory_space<vmem>>, %arg4: memref<1x32xf32, #tpu.memory_space<vmem>>, %arg5: memref<16x32xf32, #tpu.memory_space<vmem>>) attributes {dimension_semantics = [#tpu.dimension_semantics<parallel>], iteration_bounds = array<i64: 1>, scalar_prefetch = 0 : i64, scratch_operands = 0 : i64, tpu.core_type = #tpu.core_type<tc>, window_params = [{transform_indices = @transform_0, window_bounds = array<i64: 16, 8, 32>}, {pipeline_mode = #tpu.pipeline_mode<synchronous>, transform_indices = @transform_1, window_bounds = array<i64: 32, 32>}, {pipeline_mode = #tpu.pipeline_mode<synchronous>, transform_indices = @transform_2, window_bounds = array<i64: 1, 32>}, {pipeline_mode = #tpu.pipeline_mode<synchronous>, transform_indices = @transform_3, window_bounds = array<i64: 1, 32>}, {transform_indices = @transform_4, window_bounds = array<i64: 16, 32>}]} {
    %c0 = arith.constant 0 : index
    %c0_0 = arith.constant 0 : index
    %c0_1 = arith.constant 0 : index
    %0 = vector.load %arg1[%c0, %c0_0, %c0_1] : memref<16x8x32xf32, #tpu.memory_space<vmem>>, vector<16x8x32xf32>
    %1 = vector.shape_cast %0 : vector<16x8x32xf32> to vector<128x32xf32>
    %c0_2 = arith.constant 0 : index
    %c0_3 = arith.constant 0 : index
    %2 = vector.load %arg2[%c0_2, %c0_3] : memref<32x32xf32, #tpu.memory_space<vmem>>, vector<32x32xf32>
    %cst = arith.constant dense<0.000000e+00> : vector<128x32xf32>
    %3 = tpu.matmul %1, %2, %cst {dimension_numbers = #tpu.dot_dimension_numbers<[1], [0], [0], [1], [0, 0, 1, 1], [], []>} : vector<128x32xf32>, vector<32x32xf32>, vector<128x32xf32> -> vector<128x32xf32>
    %c0_4 = arith.constant 0 : index
    %c0_5 = arith.constant 0 : index
    %4 = vector.load %arg3[%c0_4, %c0_5] : memref<1x32xf32, #tpu.memory_space<vmem>>, vector<1x32xf32>
    %5 = vector.broadcast %4 : vector<1x32xf32> to vector<128x32xf32>
    %6 = arith.addf %3, %5 : vector<128x32xf32>
    %7 = math.tanh %6 : vector<128x32xf32>
    %8 = vector.shape_cast %7 : vector<128x32xf32> to vector<16x8x32xf32>
    %c0_6 = arith.constant 0 : index
    %c0_7 = arith.constant 0 : index
    %9 = vector.load %arg4[%c0_6, %c0_7] : memref<1x32xf32, #tpu.memory_space<vmem>>, vector<1x32xf32>
    %10 = vector.shape_cast %9 : vector<1x32xf32> to vector<1x1x32xf32>
    %11 = vector.broadcast %10 : vector<1x1x32xf32> to vector<16x8x32xf32>
    %12 = arith.mulf %8, %11 : vector<16x8x32xf32>
    %cst_8 = arith.constant dense<0.000000e+00> : vector<16x8xf32>
    %13 = vector.multi_reduction <add>, %12, %cst_8 [2] : vector<16x8x32xf32> to vector<16x8xf32>
    %cst_9 = arith.constant dense<0xFF800000> : vector<16xf32>
    %14 = vector.multi_reduction <maximumf>, %13, %cst_9 [1] : vector<16x8xf32> to vector<16xf32>
    %15 = vector.shape_cast %14 : vector<16xf32> to vector<16x1xf32>
    %16 = vector.broadcast %15 : vector<16x1xf32> to vector<16x8xf32>
    %17 = arith.subf %13, %16 : vector<16x8xf32>
    %18 = math.exp %17 : vector<16x8xf32>
    %cst_10 = arith.constant dense<0.000000e+00> : vector<16xf32>
    %19 = vector.multi_reduction <add>, %18, %cst_10 [1] : vector<16x8xf32> to vector<16xf32>
    %20 = vector.shape_cast %19 : vector<16xf32> to vector<16x1xf32>
    %21 = tpu.reciprocal %20 {approx = true} : vector<16x1xf32> -> vector<16x1xf32>
    %22 = arith.mulf %20, %21 : vector<16x1xf32>
    %cst_11 = arith.constant 2.000000e+00 : f32
    %23 = vector.broadcast %cst_11 : f32 to vector<16x1xf32>
    %24 = arith.subf %23, %22 : vector<16x1xf32>
    %25 = arith.mulf %21, %24 : vector<16x1xf32>
    %26 = vector.shape_cast %18 : vector<16x8xf32> to vector<16x1x8xf32>
    "tpu.trace_start"() <{level = 10 : i32, message = "bqn,bnd->bqd"}> : () -> ()
    %cst_12 = arith.constant dense<0.000000e+00> : vector<16x1x32xf32>
    %27 = tpu.matmul %26, %0, %cst_12 {dimension_numbers = #tpu.dot_dimension_numbers<[2], [1], [1], [2], [0, 0, 0, 1, 1, 2], [0], [0]>} : vector<16x1x8xf32>, vector<16x8x32xf32>, vector<16x1x32xf32> -> vector<16x1x32xf32>
    "tpu.trace_stop"() : () -> ()
    %28 = vector.shape_cast %27 : vector<16x1x32xf32> to vector<16x32xf32>
    %29 = vector.broadcast %25 : vector<16x1xf32> to vector<16x32xf32>
    %30 = arith.mulf %28, %29 : vector<16x32xf32>
    %c0_13 = arith.constant 0 : index
    %c0_14 = arith.constant 0 : index
    %31 = vector.load %arg5[%c0_13, %c0_14] : memref<16x32xf32, #tpu.memory_space<vmem>>, vector<16x32xf32>
    tpu.vector_store %arg5[%c0_13, %c0_14], %30 {strides = array<i32>} : memref<16x32xf32, #tpu.memory_space<vmem>>, vector<16x32xf32>,
    return
  }
  func.func @transform_0(%arg0: i32) -> (i32, i32, i32) {
    %c0_i32 = arith.constant 0 : i32
    %c0_i32_0 = arith.constant 0 : i32
    %c0_i32_1 = arith.constant 0 : i32
    return %arg0, %c0_i32, %c0_i32_0 : i32, i32, i32
  }
  func.func @transform_1(%arg0: i32) -> (i32, i32) {
    %c0_i32 = arith.constant 0 : i32
    %c0_i32_0 = arith.constant 0 : i32
    %c0_i32_1 = arith.constant 0 : i32
    return %c0_i32, %c0_i32_0 : i32, i32
  }
  func.func @transform_2(%arg0: i32) -> (i32, i32) {
    %c0_i32 = arith.constant 0 : i32
    %c0_i32_0 = arith.constant 0 : i32
    %c0_i32_1 = arith.constant 0 : i32
    return %c0_i32, %c0_i32_0 : i32, i32
  }
  func.func @transform_3(%arg0: i32) -> (i32, i32) {
    %c0_i32 = arith.constant 0 : i32
    %c0_i32_0 = arith.constant 0 : i32
    %c0_i32_1 = arith.constant 0 : i32
    return %c0_i32, %c0_i32_0 : i32, i32
  }
  func.func @transform_4(%arg0: i32) -> (i32, i32) {
    %c0_i32 = arith.constant 0 : i32
    %c0_i32_0 = arith.constant 0 : i32
    return %arg0, %c0_i32 : i32, i32
  }
}

</mosaic_0001>

<llo_original>
// kernel: tpu_custom_call.1
$region0: #{tpu_custom_call.1}
  #allocation0 [shape = 'u32[]', space=smem, size = 0x4, offset = 0x4, fixed_abs, tag = 'smem constant byte address 0x4 - core index']
  #allocation1 [shape = 'u32[144,128]{1,0:T(1,128)}', space=vmem, size = 0x12000, scoped, tag = 'internal scratch']
  %s0 = inlined_call_operand.hbm [shape: f32[16,8,32], index: 0, kind: input, shape index: {}]
  %s1 = inlined_call_operand.hbm [shape: f32[32,32], index: 1, kind: input, shape index: {}]
  %s2 = inlined_call_operand.vmem [shape: f32[1,32], index: 2, kind: input, shape index: {}]
  %s3 = inlined_call_operand.vmem [shape: f32[1,32], index: 3, kind: input, shape index: {}]
  %s4 = inlined_call_operand.hbm [shape: f32[16,32], index: 4, kind: output, shape index: {}]
  %s5 = sld [smem:[#allocation0]]
  $region34: #{tpu_custom_call.1} parent=0
    _
  %s7 = ssub.s32 1, %s5
  %s8 = scalar_select 0, %s7, %s5
  $region1: #{tpu_custom_call.1} parent=0
    #allocation2 [shape = 'u8[65536]{0}', space=vmem, size = 0x10000, scoped, tag = 'input window, operand 0, single buffered']
    #allocation3 [shape = 's32[1]{0}', space=sflag, size = 0x4, scoped, tag = 'scoped memory for tpu_custom_call.1']
    #allocation4 [shape = 's32[1]{0}', space=sflag, size = 0x4, scoped, tag = 'scoped memory for tpu_custom_call.1']
    #allocation5 [shape = 'u8[16384]{0}', space=vmem, size = 0x4000, scoped, tag = 'input window, operand 1, single buffered']
    #allocation6 [shape = 's32[1]{0}', space=sflag, size = 0x4, scoped, tag = 'scoped memory for tpu_custom_call.1']
    #allocation7 [shape = 'u8[8192]{0}', space=vmem, size = 0x2000, scoped, tag = 'output window, operand 0, single buffered']
    %9 = vsyncpa [#allocation3], 0
    %10 = vsyncpa [#allocation6], 0
    %11 = vsyncpa [#allocation4], 0
    // Predicated region
    $region2: #{tpu_custom_call.1} parent=1 // pred_check
      _
    $region3: #{tpu_custom_call.1} parent=1 // pred_check_branch
      %13 = sbr.rel (0) target = $region5
    $region4: #{tpu_custom_call.1} parent=1 // pred_region
      %s15 = ssub.s32 2048, 2048
      %16 = vsyncadd [#allocation3], %s15
      %s17 = sshll.u32 [#allocation2], 4
      %s18 = int_to_ptr.vmem [resolvable:$true] %s17
      %23 = dma.hbm_to_vmem [thread:$0]  %s0, 2048, %s18, [#allocation3], 128, 128, 8
    $region5: #{tpu_custom_call.1} parent=1 // pred_fallthru
      _
    // Predicated region
    $region6: #{tpu_custom_call.1} parent=1 // pred_check
      _
    $region7: #{tpu_custom_call.1} parent=1 // pred_check_branch
      %25 = sbr.rel (0) target = $region9
    $region8: #{tpu_custom_call.1} parent=1 // pred_region
      %s27 = ssub.s32 512, 512
      %28 = vsyncadd [#allocation6], %s27
      %s29 = sshll.u32 [#allocation5], 4
      %s30 = int_to_ptr.vmem [resolvable:$true] %s29
      %35 = dma.hbm_to_vmem [thread:$0]  %s1, 512, %s30, [#allocation6], 128, 128, 8
    $region9: #{tpu_custom_call.1} parent=1 // pred_fallthru
      _
    // Predicated region
    $region10: #{tpu_custom_call.1} parent=1 // pred_check
      _
    $region11: #{tpu_custom_call.1} parent=1 // pred_check_branch
      %37 = sbr.rel (0) target = $region13
    $region12: #{tpu_custom_call.1} parent=1 // pred_region
      _
    $region13: #{tpu_custom_call.1} parent=1 // pred_fallthru
      _
    // Predicated region
    $region14: #{tpu_custom_call.1} parent=1 // pred_check
      _
    $region15: #{tpu_custom_call.1} parent=1 // pred_check_branch
      %39 = sbr.rel (0) target = $region17
    $region16: #{tpu_custom_call.1} parent=1 // pred_region
      _
    $region17: #{tpu_custom_call.1} parent=1 // pred_fallthru
      _
    // Predicated region
    $region18: #{tpu_custom_call.1} parent=1 // pred_check
      _
    $region19: #{tpu_custom_call.1} parent=1 // pred_check_branch
      %41 = sbr.rel (0) target = $region21
    $region20: #{tpu_custom_call.1} parent=1 // pred_region
      %42 = dma.done [#allocation3], 2048
    $region21: #{tpu_custom_call.1} parent=1 // pred_fallthru
      _
    // Predicated region
    $region22: #{tpu_custom_call.1} parent=1 // pred_check
      _
    $region23: #{tpu_custom_call.1} parent=1 // pred_check_branch
      %44 = sbr.rel (0) target = $region25
    $region24: #{tpu_custom_call.1} parent=1 // pred_region
      %45 = dma.done [#allocation6], 512
    $region25: #{tpu_custom_call.1} parent=1 // pred_fallthru
      _
    %v46 = vld [vmem:[#allocation2] sm:$0xff]
    %v47 = vld [vmem:[#allocation2 + $0x8] sm:$0xff]
    %v48 = vld [vmem:[#allocation2 + $0x10] sm:$0xff]
    %v49 = vld [vmem:[#allocation2 + $0x18] sm:$0xff]
    %v50 = vld [vmem:[#allocation2 + $0x20] sm:$0xff]
    %v51 = vld [vmem:[#allocation2 + $0x28] sm:$0xff]
    %v52 = vld [vmem:[#allocation2 + $0x30] sm:$0xff]
    %v53 = vld [vmem:[#allocation2 + $0x38] sm:$0xff]
    %v54 = vld [vmem:[#allocation2 + $0x40] sm:$0xff]
    %v55 = vld [vmem:[#allocation2 + $0x48] sm:$0xff]
    %v56 = vld [vmem:[#allocation2 + $0x50] sm:$0xff]
    %v57 = vld [vmem:[#allocation2 + $0x58] sm:$0xff]
    %v58 = vld [vmem:[#allocation2 + $0x60] sm:$0xff]
    %v59 = vld [vmem:[#allocation2 + $0x68] sm:$0xff]
    %v60 = vld [vmem:[#allocation2 + $0x70] sm:$0xff]
    %v61 = vld [vmem:[#allocation2 + $0x78] sm:$0xff]
    %v62 = vld [vmem:[#allocation5] sm:$0xff]
    %v63 = vld [vmem:[#allocation5 + $0x8] sm:$0xff]
    %v64 = vld [vmem:[#allocation5 + $0x10] sm:$0xff]
    %v65 = vld [vmem:[#allocation5 + $0x18] sm:$0xff]
    %v66 = vld [vmem:[%s2] sm:$0x1]
    %v68 = vlaneseq
    %v69 = vshrl.u32 %v68, 7
    %v70 = vsub.s32 0, %v69
    %v71 = vrot.slane %v66, %v70
    %vm73 = vcmask 261120
    %v75 = vsel %vm73, %v46, 0
    %v78 = vsel %vm73, %v47, 0
    %v81 = vsel %vm73, %v48, 0
    %v84 = vsel %vm73, %v49, 0
    %v87 = vsel %vm73, %v50, 0
    %v90 = vsel %vm73, %v51, 0
    %v93 = vsel %vm73, %v52, 0
    %v96 = vsel %vm73, %v53, 0
    %v99 = vsel %vm73, %v54, 0
    %v102 = vsel %vm73, %v55, 0
    %v105 = vsel %vm73, %v56, 0
    %v108 = vsel %vm73, %v57, 0
    %v111 = vsel %vm73, %v58, 0
    %v114 = vsel %vm73, %v59, 0
    %v117 = vsel %vm73, %v60, 0
    %v120 = vsel %vm73, %v61, 0
    %122 = vmatprep.subr.mxu0 0.0
    %123 = vmatpush1.msra.mxu0 0.0
    %124 = vmatprep.subr.mxu0 0.0
    %125 = vmatpush1.msra.mxu0 0.0
    %126 = vmatprep.subr.mxu0 0.0
    %127 = vmatpush1.msra.mxu0 0.0
    %128 = vmatprep.subr.mxu0 0.0
    %129 = vmatpush1.msra.mxu0 0.0
    %130 = vmatprep.subr.mxu0 0.0
    %131 = vmatpush1.msra.mxu0 0.0
    %132 = vmatprep.subr.mxu0 0.0
    %133 = vmatpush1.msra.mxu0 0.0
    %134 = vmatprep.subr.mxu0 0.0
    %135 = vmatpush1.msra.mxu0 0.0
    %136 = vmatprep.subr.mxu0 0.0
    %137 = vmatpush1.msra.mxu0 0.0
    %138 = vmatprep.subr.mxu0 0.0
    %139 = vmatpush1.msra.mxu0 0.0
    %140 = vmatprep.subr.mxu0 0.0
    %141 = vmatpush1.msra.mxu0 0.0
    %142 = vmatprep.subr.mxu0 0.0
    %143 = vmatpush1.msra.mxu0 0.0
    %144 = vmatprep.subr.mxu0 0.0
    %145 = vmatpush1.msra.mxu0 0.0
    %146 = vmatprep.subr.mxu0 0.0
    %147 = vmatpush1.msra.mxu0 %v65
    %148 = vmatprep.subr.mxu0 0.0
    %149 = vmatpush1.msra.mxu0 %v64
    %150 = vmatprep.subr.mxu0 0.0
    %151 = vmatpush1.msra.mxu0 %v63
    %152 = vmatprep.subr.mxu0 0.0
    %153 = vmatpush1.msra.mxu0 %v62
    %154 = vmatprep.subr.mxu0 0.0
    %155 = vmatpush2.msra.mxu0 0.0
    %156 = vmatprep.subr.mxu0 0.0
    %157 = vmatpush2.msra.mxu0 0.0
    %158 = vmatprep.subr.mxu0 0.0
    %159 = vmatpush2.msra.mxu0 0.0
    %160 = vmatprep.subr.mxu0 0.0
    %161 = vmatpush2.msra.mxu0 0.0
    %162 = vmatprep.subr.mxu0 0.0
    %163 = vmatpush2.msra.mxu0 0.0
    %164 = vmatprep.subr.mxu0 0.0
    %165 = vmatpush2.msra.mxu0 0.0
    %166 = vmatprep.subr.mxu0 0.0
    %167 = vmatpush2.msra.mxu0 0.0
    %168 = vmatprep.subr.mxu0 0.0
    %169 = vmatpush2.msra.mxu0 0.0
    %170 = vmatprep.subr.mxu0 0.0
    %171 = vmatpush2.msra.mxu0 0.0
    %172 = vmatprep.subr.mxu0 0.0
    %173 = vmatpush2.msra.mxu0 0.0
    %174 = vmatprep.subr.mxu0 0.0
    %175 = vmatpush2.msra.mxu0 0.0
    %176 = vmatprep.subr.mxu0 0.0
    %177 = vmatpush2.msra.mxu0 0.0
    %178 = vmatprep.subr.mxu0 0.0
    %179 = vmatpush2.msra.mxu0 0.0
    %180 = vmatprep.subr.mxu0 0.0
    %181 = vmatpush2.msra.mxu0 0.0
    %182 = vmatprep.subr.mxu0 0.0
    %183 = vmatpush2.msra.mxu0 0.0
    %184 = vmatprep.subr.mxu0 0.0
    %185 = vmatpush2.msra.mxu0 0.0
    %186 = vmatprep.mubr.f32.mxu0 0.0
    %187 = vmatmul.mubr.f32.gmra.mxu0 %v75
    %v188 = vpop.f32.mrf.mxu0
    %v189 = vadd.f32 %v71, %v188
    %v190 = vpop.f32.mrf.mxu0
    %191 = vmatprep.mubr.f32.mxu0 0.0
    %192 = vmatmul.mubr.f32.gmra.mxu0 %v78
    %v193 = vpop.f32.mrf.mxu0
    %v194 = vadd.f32 %v71, %v193
    %v195 = vpop.f32.mrf.mxu0
    %196 = vmatprep.mubr.f32.mxu0 0.0
    %197 = vmatmul.mubr.f32.gmra.mxu0 %v81
    %v198 = vpop.f32.mrf.mxu0
    %v199 = vadd.f32 %v71, %v198
    %v200 = vpop.f32.mrf.mxu0
    %201 = vmatprep.mubr.f32.mxu0 0.0
    %202 = vmatmul.mubr.f32.gmra.mxu0 %v84
    %v203 = vpop.f32.mrf.mxu0
    %v204 = vadd.f32 %v71, %v203
    %v205 = vpop.f32.mrf.mxu0
    %206 = vmatprep.mubr.f32.mxu0 0.0
    %207 = vmatmul.mubr.f32.gmra.mxu0 %v87
    %v208 = vpop.f32.mrf.mxu0
    %v209 = vadd.f32 %v71, %v208
    %v210 = vpop.f32.mrf.mxu0
    %211 = vmatprep.mubr.f32.mxu0 0.0
    %212 = vmatmul.mubr.f32.gmra.mxu0 %v90
    %v213 = vpop.f32.mrf.mxu0
    %v214 = vadd.f32 %v71, %v213
    %v215 = vpop.f32.mrf.mxu0
    %216 = vmatprep.mubr.f32.mxu0 0.0
    %217 = vmatmul.mubr.f32.gmra.mxu0 %v93
    %v218 = vpop.f32.mrf.mxu0
    %v219 = vadd.f32 %v71, %v218
    %v220 = vpop.f32.mrf.mxu0
    %221 = vmatprep.mubr.f32.mxu0 0.0
    %222 = vmatmul.mubr.f32.gmra.mxu0 %v96
    %v223 = vpop.f32.mrf.mxu0
    %v224 = vadd.f32 %v71, %v223
    %v225 = vpop.f32.mrf.mxu0
    %226 = vmatprep.mubr.f32.mxu0 0.0
    %227 = vmatmul.mubr.f32.gmra.mxu0 %v99
    %v228 = vpop.f32.mrf.mxu0
    %v229 = vadd.f32 %v71, %v228
    %v230 = vpop.f32.mrf.mxu0
    %231 = vmatprep.mubr.f32.mxu0 0.0
    %232 = vmatmul.mubr.f32.gmra.mxu0 %v102
    %v233 = vpop.f32.mrf.mxu0
    %v234 = vadd.f32 %v71, %v233
    %v235 = vpop.f32.mrf.mxu0
    %236 = vmatprep.mubr.f32.mxu0 0.0
    %237 = vmatmul.mubr.f32.gmra.mxu0 %v105
    %v238 = vpop.f32.mrf.mxu0
    %v239 = vadd.f32 %v71, %v238
    %v240 = vpop.f32.mrf.mxu0
    %241 = vmatprep.mubr.f32.mxu0 0.0
    %242 = vmatmul.mubr.f32.gmra.mxu0 %v108
    %v243 = vpop.f32.mrf.mxu0
    %v244 = vadd.f32 %v71, %v243
    %v245 = vpop.f32.mrf.mxu0
    %246 = vmatprep.mubr.f32.mxu0 0.0
    %247 = vmatmul.mubr.f32.gmra.mxu0 %v111
    %v248 = vpop.f32.mrf.mxu0
    %v249 = vadd.f32 %v71, %v248
    %v250 = vpop.f32.mrf.mxu0
    %251 = vmatprep.mubr.f32.mxu0 0.0
    %252 = vmatmul.mubr.f32.gmra.mxu0 %v114
    %v253 = vpop.f32.mrf.mxu0
    %v254 = vadd.f32 %v71, %v253
    %v255 = vpop.f32.mrf.mxu0
    %256 = vmatprep.mubr.f32.mxu0 0.0
    %257 = vmatmul.mubr.f32.gmra.mxu0 %v117
    %v258 = vpop.f32.mrf.mxu0
    %v259 = vadd.f32 %v71, %v258
    %v260 = vpop.f32.mrf.mxu0
    %261 = vmatprep.mubr.f32.mxu0 0.0
    %262 = vmatmul.mubr.f32.gmra.mxu0 %v120
    %v263 = vpop.f32.mrf.mxu0
    %v264 = vadd.f32 %v71, %v263
    %v265 = vpop.f32.mrf.mxu0
    %266 = vdwg.mxu0
    %v267 = vtanh.pop %v189
    %v268 = vtanh.pop %v194
    %v269 = vtanh.pop %v199
    %v270 = vtanh.pop %v204
    %v271 = vtanh.pop %v209
    %v272 = vtanh.pop %v214
    %v273 = vtanh.pop %v219
    %v274 = vtanh.pop %v224
    %v275 = vtanh.pop %v229
    %v276 = vtanh.pop %v234
    %v277 = vtanh.pop %v239
    %v278 = vtanh.pop %v244
    %v279 = vtanh.pop %v249
    %v280 = vtanh.pop %v254
    %v281 = vtanh.pop %v259
    %v282 = vtanh.pop %v264
    %v283 = vld [vmem:[%s3] sm:$0x1]
    %v285 = vlaneseq
    %v286 = vshrl.u32 %v285, 7
    %v287 = vsub.s32 0, %v286
    %v288 = vrot.slane %v283, %v287
    %v290 = vmul.f32 %v267, %v288
    %v291 = vmul.f32 %v268, %v288
    %v292 = vmul.f32 %v269, %v288
    %v293 = vmul.f32 %v270, %v288
    %v294 = vmul.f32 %v271, %v288
    %v295 = vmul.f32 %v272, %v288
    %v296 = vmul.f32 %v273, %v288
    %v297 = vmul.f32 %v274, %v288
    %v298 = vmul.f32 %v275, %v288
    %v299 = vmul.f32 %v276, %v288
    %v300 = vmul.f32 %v277, %v288
    %v301 = vmul.f32 %v278, %v288
    %v302 = vmul.f32 %v279, %v288
    %v303 = vmul.f32 %v280, %v288
    %v304 = vmul.f32 %v281, %v288
    %v305 = vmul.f32 %v282, %v288
    %v306 = vsel %vm73, %v290, 0.0
    %307 = vadd.xlane.f32.xlu0 %v306
    %v308 = vpop.xlane.xlu0 %307
    %v309 = vsel %vm73, %v291, 0.0
    %310 = vadd.xlane.f32.xlu0 %v309
    %v311 = vpop.xlane.xlu0 %310
    %v312 = vsel %vm73, %v292, 0.0
    %313 = vadd.xlane.f32.xlu0 %v312
    %v314 = vpop.xlane.xlu0 %313
    %v315 = vsel %vm73, %v293, 0.0
    %316 = vadd.xlane.f32.xlu0 %v315
    %v317 = vpop.xlane.xlu0 %316
    %v318 = vsel %vm73, %v294, 0.0
    %319 = vadd.xlane.f32.xlu0 %v318
    %v320 = vpop.xlane.xlu0 %319
    %v321 = vsel %vm73, %v295, 0.0
    %322 = vadd.xlane.f32.xlu0 %v321
    %v323 = vpop.xlane.xlu0 %322
    %v324 = vsel %vm73, %v296, 0.0
    %325 = vadd.xlane.f32.xlu0 %v324
    %v326 = vpop.xlane.xlu0 %325
    %v327 = vsel %vm73, %v297, 0.0
    %328 = vadd.xlane.f32.xlu0 %v327
    %v329 = vpop.xlane.xlu0 %328
    %v330 = vsel %vm73, %v298, 0.0
    %331 = vadd.xlane.f32.xlu0 %v330
    %v332 = vpop.xlane.xlu0 %331
    %v333 = vsel %vm73, %v299, 0.0
    %334 = vadd.xlane.f32.xlu0 %v333
    %v335 = vpop.xlane.xlu0 %334
    %v336 = vsel %vm73, %v300, 0.0
    %337 = vadd.xlane.f32.xlu0 %v336
    %v338 = vpop.xlane.xlu0 %337
    %v339 = vsel %vm73, %v301, 0.0
    %340 = vadd.xlane.f32.xlu0 %v339
    %v341 = vpop.xlane.xlu0 %340
    %v342 = vsel %vm73, %v302, 0.0
    %343 = vadd.xlane.f32.xlu0 %v342
    %v344 = vpop.xlane.xlu0 %343
    %v345 = vsel %vm73, %v303, 0.0
    %346 = vadd.xlane.f32.xlu0 %v345
    %v347 = vpop.xlane.xlu0 %346
    %v348 = vsel %vm73, %v304, 0.0
    %349 = vadd.xlane.f32.xlu0 %v348
    %v350 = vpop.xlane.xlu0 %349
    %v351 = vsel %vm73, %v305, 0.0
    %352 = vadd.xlane.f32.xlu0 %v351
    %v353 = vpop.xlane.xlu0 %352
    %v370 = vlaneseq
    %v371 = vand.u32 %v370, 127
    %v372 = vlaneseq
    %v373 = vshrl.u32 %v372, 7
    %v374 = vsub.s32 %v371, %v373
    %v375 = vrot.slane %v308, %v374
    %v376 = vlaneseq
    %v377 = vshrl.u32 %v376, 7
    %v378 = vsub.s32 %v371, %v377
    %v379 = vrot.slane %v311, %v378
    %v380 = vlaneseq
    %v381 = vshrl.u32 %v380, 7
    %v382 = vsub.s32 %v371, %v381
    %v383 = vrot.slane %v314, %v382
    %v384 = vlaneseq
    %v385 = vshrl.u32 %v384, 7
    %v386 = vsub.s32 %v371, %v385
    %v387 = vrot.slane %v317, %v386
    %v388 = vlaneseq
    %v389 = vshrl.u32 %v388, 7
    %v390 = vsub.s32 %v371, %v389
    %v391 = vrot.slane %v320, %v390
    %v392 = vlaneseq
    %v393 = vshrl.u32 %v392, 7
    %v394 = vsub.s32 %v371, %v393
    %v395 = vrot.slane %v323, %v394
    %v396 = vlaneseq
    %v397 = vshrl.u32 %v396, 7
    %v398 = vsub.s32 %v371, %v397
    %v399 = vrot.slane %v326, %v398
    %v400 = vlaneseq
    %v401 = vshrl.u32 %v400, 7
    %v402 = vsub.s32 %v371, %v401
    %v403 = vrot.slane %v329, %v402
    %v404 = vlaneseq
    %v405 = vshrl.u32 %v404, 7
    %v406 = vsub.s32 %v371, %v405
    %v407 = vrot.slane %v332, %v406
    %v408 = vlaneseq
    %v409 = vshrl.u32 %v408, 7
    %v410 = vsub.s32 %v371, %v409
    %v411 = vrot.slane %v335, %v410
    %v412 = vlaneseq
    %v413 = vshrl.u32 %v412, 7
    %v414 = vsub.s32 %v371, %v413
    %v415 = vrot.slane %v338, %v414
    %v416 = vlaneseq
    %v417 = vshrl.u32 %v416, 7
    %v418 = vsub.s32 %v371, %v417
    %v419 = vrot.slane %v341, %v418
    %v420 = vlaneseq
    %v421 = vshrl.u32 %v420, 7
    %v422 = vsub.s32 %v371, %v421
    %v423 = vrot.slane %v344, %v422
    %v424 = vlaneseq
    %v425 = vshrl.u32 %v424, 7
    %v426 = vsub.s32 %v371, %v425
    %v427 = vrot.slane %v347, %v426
    %v428 = vlaneseq
    %v429 = vshrl.u32 %v428, 7
    %v430 = vsub.s32 %v371, %v429
    %v431 = vrot.slane %v350, %v430
    %v432 = vlaneseq
    %v433 = vshrl.u32 %v432, 7
    %v434 = vsub.s32 %v371, %v433
    %v435 = vrot.slane %v353, %v434
    %vm436 = vcmask 1041409
    %v437 = vsel %vm436, %v379, %v375
    %vm438 = vcmask 1042434
    %v439 = vsel %vm438, %v383, %v437
    %vm440 = vcmask 1043459
    %v441 = vsel %vm440, %v387, %v439
    %vm442 = vcmask 1044484
    %v443 = vsel %vm442, %v391, %v441
    %vm444 = vcmask 1045509
    %v445 = vsel %vm444, %v395, %v443
    %vm446 = vcmask 1046534
    %v447 = vsel %vm446, %v399, %v445
    %vm448 = vcmask 1047559
    %v449 = vsel %vm448, %v403, %v447
    %v450 = vsel %vm436, %v411, %v407
    %v451 = vsel %vm438, %v415, %v450
    %v452 = vsel %vm440, %v419, %v451
    %v453 = vsel %vm442, %v423, %v452
    %v454 = vsel %vm444, %v427, %v453
    %v455 = vsel %vm446, %v431, %v454
    %v456 = vsel %vm448, %v435, %v455
    %vm459 = vcmask 64512
    %v460 = vsel %vm459, %v449, -inf
    %461 = vmax.xlane.f32.xlu0 %v460
    %v462 = vpop.xlane.xlu0 %461
    %v463 = vsel %vm459, %v456, -inf
    %464 = vmax.xlane.f32.xlu0 %v463
    %v465 = vpop.xlane.xlu0 %464
    %v468 = vlaneseq
    %v469 = vshrl.u32 %v468, 7
    %v470 = vsub.s32 0, %v469
    %v471 = vrot.slane %v462, %v470
    %v472 = vlaneseq
    %v473 = vshrl.u32 %v472, 7
    %v474 = vsub.s32 1, %v473
    %v475 = vrot.slane %v462, %v474
    %v476 = vlaneseq
    %v477 = vshrl.u32 %v476, 7
    %v478 = vsub.s32 2, %v477
    %v479 = vrot.slane %v462, %v478
    %v480 = vlaneseq
    %v481 = vshrl.u32 %v480, 7
    %v482 = vsub.s32 3, %v481
    %v483 = vrot.slane %v462, %v482
    %v484 = vlaneseq
    %v485 = vshrl.u32 %v484, 7
    %v486 = vsub.s32 4, %v485
    %v487 = vrot.slane %v462, %v486
    %v488 = vlaneseq
    %v489 = vshrl.u32 %v488, 7
    %v490 = vsub.s32 5, %v489
    %v491 = vrot.slane %v462, %v490
    %v492 = vlaneseq
    %v493 = vshrl.u32 %v492, 7
    %v494 = vsub.s32 6, %v493
    %v495 = vrot.slane %v462, %v494
    %v496 = vlaneseq
    %v497 = vshrl.u32 %v496, 7
    %v498 = vsub.s32 7, %v497
    %v499 = vrot.slane %v462, %v498
    %v500 = vlaneseq
    %v501 = vshrl.u32 %v500, 7
    %v502 = vsub.s32 0, %v501
    %v503 = vrot.slane %v465, %v502
    %v504 = vlaneseq
    %v505 = vshrl.u32 %v504, 7
    %v506 = vsub.s32 1, %v505
    %v507 = vrot.slane %v465, %v506
    %v508 = vlaneseq
    %v509 = vshrl.u32 %v508, 7
    %v510 = vsub.s32 2, %v509
    %v511 = vrot.slane %v465, %v510
    %v512 = vlaneseq
    %v513 = vshrl.u32 %v512, 7
    %v514 = vsub.s32 3, %v513
    %v515 = vrot.slane %v465, %v514
    %v516 = vlaneseq
    %v517 = vshrl.u32 %v516, 7
    %v518 = vsub.s32 4, %v517
    %v519 = vrot.slane %v465, %v518
    %v520 = vlaneseq
    %v521 = vshrl.u32 %v520, 7
    %v522 = vsub.s32 5, %v521
    %v523 = vrot.slane %v465, %v522
    %v524 = vlaneseq
    %v525 = vshrl.u32 %v524, 7
    %v526 = vsub.s32 6, %v525
    %v527 = vrot.slane %v465, %v526
    %v528 = vlaneseq
    %v529 = vshrl.u32 %v528, 7
    %v530 = vsub.s32 7, %v529
    %v531 = vrot.slane %v465, %v530
    %v548 = vsub.f32 %v308, %v471
    %v549 = vsub.f32 %v311, %v475
    %v550 = vsub.f32 %v314, %v479
    %v551 = vsub.f32 %v317, %v483
    %v552 = vsub.f32 %v320, %v487
    %v553 = vsub.f32 %v323, %v491
    %v554 = vsub.f32 %v326, %v495
    %v555 = vsub.f32 %v329, %v499
    %v556 = vsub.f32 %v332, %v503
    %v557 = vsub.f32 %v335, %v507
    %v558 = vsub.f32 %v338, %v511
    %v559 = vsub.f32 %v341, %v515
    %v560 = vsub.f32 %v344, %v519
    %v561 = vsub.f32 %v347, %v523
    %v562 = vsub.f32 %v350, %v527
    %v563 = vsub.f32 %v353, %v531
    %v564 = vmul.f32 %v548, 1.442695
    %v565 = vpow.pop %v564
    %v566 = vmul.f32 %v549, 1.442695
    %v567 = vpow.pop %v566
    %v568 = vmul.f32 %v550, 1.442695
    %v569 = vpow.pop %v568
    %v570 = vmul.f32 %v551, 1.442695
    %v571 = vpow.pop %v570
    %v572 = vmul.f32 %v552, 1.442695
    %v573 = vpow.pop %v572
    %v574 = vmul.f32 %v553, 1.442695
    %v575 = vpow.pop %v574
    %v576 = vmul.f32 %v554, 1.442695
    %v577 = vpow.pop %v576
    %v578 = vmul.f32 %v555, 1.442695
    %v579 = vpow.pop %v578
    %v580 = vmul.f32 %v556, 1.442695
    %v581 = vpow.pop %v580
    %v582 = vmul.f32 %v557, 1.442695
    %v583 = vpow.pop %v582
    %v584 = vmul.f32 %v558, 1.442695
    %v585 = vpow.pop %v584
    %v586 = vmul.f32 %v559, 1.442695
    %v587 = vpow.pop %v586
    %v588 = vmul.f32 %v560, 1.442695
    %v589 = vpow.pop %v588
    %v590 = vmul.f32 %v561, 1.442695
    %v591 = vpow.pop %v590
    %v592 = vmul.f32 %v562, 1.442695
    %v593 = vpow.pop %v592
    %v594 = vmul.f32 %v563, 1.442695
    %v595 = vpow.pop %v594
    %612 = vset.pattern.permute.xlu0 0
    %613 = vperm.xlu0 %612, %v565
    %v614 = vpop.permute.xlu0 %613
    %615 = vset.pattern.permute.xlu0 0
    %616 = vperm.xlu0 %615, %v567
    %v617 = vpop.permute.xlu0 %616
    %618 = vset.pattern.permute.xlu0 0
    %619 = vperm.xlu0 %618, %v569
    %v620 = vpop.permute.xlu0 %619
    %621 = vset.pattern.permute.xlu0 0
    %622 = vperm.xlu0 %621, %v571
    %v623 = vpop.permute.xlu0 %622
    %624 = vset.pattern.permute.xlu0 0
    %625 = vperm.xlu0 %624, %v573
    %v626 = vpop.permute.xlu0 %625
    %627 = vset.pattern.permute.xlu0 0
    %628 = vperm.xlu0 %627, %v575
    %v629 = vpop.permute.xlu0 %628
    %630 = vset.pattern.permute.xlu0 0
    %631 = vperm.xlu0 %630, %v577
    %v632 = vpop.permute.xlu0 %631
    %633 = vset.pattern.permute.xlu0 0
    %634 = vperm.xlu0 %633, %v579
    %v635 = vpop.permute.xlu0 %634
    %636 = vset.pattern.permute.xlu0 0
    %637 = vperm.xlu0 %636, %v581
    %v638 = vpop.permute.xlu0 %637
    %639 = vset.pattern.permute.xlu0 0
    %640 = vperm.xlu0 %639, %v583
    %v641 = vpop.permute.xlu0 %640
    %642 = vset.pattern.permute.xlu0 0
    %643 = vperm.xlu0 %642, %v585
    %v644 = vpop.permute.xlu0 %643
    %645 = vset.pattern.permute.xlu0 0
    %646 = vperm.xlu0 %645, %v587
    %v647 = vpop.permute.xlu0 %646
    %648 = vset.pattern.permute.xlu0 0
    %649 = vperm.xlu0 %648, %v589
    %v650 = vpop.permute.xlu0 %649
    %651 = vset.pattern.permute.xlu0 0
    %652 = vperm.xlu0 %651, %v591
    %v653 = vpop.permute.xlu0 %652
    %654 = vset.pattern.permute.xlu0 0
    %655 = vperm.xlu0 %654, %v593
    %v656 = vpop.permute.xlu0 %655
    %657 = vset.pattern.permute.xlu0 0
    %658 = vperm.xlu0 %657, %v595
    %v659 = vpop.permute.xlu0 %658
    %v660 = vlaneseq
    %v661 = vshrl.u32 %v660, 7
    %v662 = vsub.s32 %v371, %v661
    %v663 = vrot.slane %v614, %v662
    %v664 = vlaneseq
    %v665 = vshrl.u32 %v664, 7
    %v666 = vsub.s32 %v371, %v665
    %v667 = vrot.slane %v617, %v666
    %v668 = vlaneseq
    %v669 = vshrl.u32 %v668, 7
    %v670 = vsub.s32 %v371, %v669
    %v671 = vrot.slane %v620, %v670
    %v672 = vlaneseq
    %v673 = vshrl.u32 %v672, 7
    %v674 = vsub.s32 %v371, %v673
    %v675 = vrot.slane %v623, %v674
    %v676 = vlaneseq
    %v677 = vshrl.u32 %v676, 7
    %v678 = vsub.s32 %v371, %v677
    %v679 = vrot.slane %v626, %v678
    %v680 = vlaneseq
    %v681 = vshrl.u32 %v680, 7
    %v682 = vsub.s32 %v371, %v681
    %v683 = vrot.slane %v629, %v682
    %v684 = vlaneseq
    %v685 = vshrl.u32 %v684, 7
    %v686 = vsub.s32 %v371, %v685
    %v687 = vrot.slane %v632, %v686
    %v688 = vlaneseq
    %v689 = vshrl.u32 %v688, 7
    %v690 = vsub.s32 %v371, %v689
    %v691 = vrot.slane %v635, %v690
    %v692 = vlaneseq
    %v693 = vshrl.u32 %v692, 7
    %v694 = vsub.s32 %v371, %v693
    %v695 = vrot.slane %v638, %v694
    %v696 = vlaneseq
    %v697 = vshrl.u32 %v696, 7
    %v698 = vsub.s32 %v371, %v697
    %v699 = vrot.slane %v641, %v698
    %v700 = vlaneseq
    %v701 = vshrl.u32 %v700, 7
    %v702 = vsub.s32 %v371, %v701
    %v703 = vrot.slane %v644, %v702
    %v704 = vlaneseq
    %v705 = vshrl.u32 %v704, 7
    %v706 = vsub.s32 %v371, %v705
    %v707 = vrot.slane %v647, %v706
    %v708 = vlaneseq
    %v709 = vshrl.u32 %v708, 7
    %v710 = vsub.s32 %v371, %v709
    %v711 = vrot.slane %v650, %v710
    %v712 = vlaneseq
    %v713 = vshrl.u32 %v712, 7
    %v714 = vsub.s32 %v371, %v713
    %v715 = vrot.slane %v653, %v714
    %v716 = vlaneseq
    %v717 = vshrl.u32 %v716, 7
    %v718 = vsub.s32 %v371, %v717
    %v719 = vrot.slane %v656, %v718
    %v720 = vlaneseq
    %v721 = vshrl.u32 %v720, 7
    %v722 = vsub.s32 %v371, %v721
    %v723 = vrot.slane %v659, %v722
    %v724 = vsel %vm436, %v667, %v663
    %v725 = vsel %vm438, %v671, %v724
    %v726 = vsel %vm440, %v675, %v725
    %v727 = vsel %vm442, %v679, %v726
    %v728 = vsel %vm444, %v683, %v727
    %v729 = vsel %vm446, %v687, %v728
    %v730 = vsel %vm448, %v691, %v729
    %v731 = vsel %vm436, %v699, %v695
    %v732 = vsel %vm438, %v703, %v731
    %v733 = vsel %vm440, %v707, %v732
    %v734 = vsel %vm442, %v711, %v733
    %v735 = vsel %vm444, %v715, %v734
    %v736 = vsel %vm446, %v719, %v735
    %v737 = vsel %vm448, %v723, %v736
    %v740 = vsel %vm459, %v730, 0.0
    %741 = vadd.xlane.f32.xlu0 %v740
    %v742 = vpop.xlane.xlu0 %741
    %v743 = vsel %vm459, %v737, 0.0
    %744 = vadd.xlane.f32.xlu0 %v743
    %v745 = vpop.xlane.xlu0 %744
    %v746 = vrcp.pop %v742
    %v747 = vrcp.pop %v745
    %v748 = vmul.f32 %v742, %v746
    %v749 = vmul.f32 %v745, %v747
    %v750 = vsub.f32 2.0, %v748
    %v751 = vsub.f32 2.0, %v749
    %v752 = vmul.f32 %v746, %v750
    %v753 = vmul.f32 %v747, %v751
    %v754 = vsel %vm459, %v663, 0
    %756 = vmatprep.subr.mxu0 0.0
    %757 = vmatpush1.msra.mxu0 0.0
    %758 = vmatprep.subr.mxu0 0.0
    %759 = vmatpush1.msra.mxu0 0.0
    %760 = vmatprep.subr.mxu0 0.0
    %761 = vmatpush1.msra.mxu0 0.0
    %762 = vmatprep.subr.mxu0 0.0
    %763 = vmatpush1.msra.mxu0 0.0
    %764 = vmatprep.subr.mxu0 0.0
    %765 = vmatpush1.msra.mxu0 0.0
    %766 = vmatprep.subr.mxu0 0.0
    %767 = vmatpush1.msra.mxu0 0.0
    %768 = vmatprep.subr.mxu0 0.0
    %769 = vmatpush1.msra.mxu0 0.0
    %770 = vmatprep.subr.mxu0 0.0
    %771 = vmatpush1.msra.mxu0 0.0
    %772 = vmatprep.subr.mxu0 0.0
    %773 = vmatpush1.msra.mxu0 0.0
    %774 = vmatprep.subr.mxu0 0.0
    %775 = vmatpush1.msra.mxu0 0.0
    %776 = vmatprep.subr.mxu0 0.0
    %777 = vmatpush1.msra.mxu0 0.0
    %778 = vmatprep.subr.mxu0 0.0
    %779 = vmatpush1.msra.mxu0 0.0
    %780 = vmatprep.subr.mxu0 0.0
    %781 = vmatpush1.msra.mxu0 0.0
    %782 = vmatprep.subr.mxu0 0.0
    %783 = vmatpush1.msra.mxu0 0.0
    %784 = vmatprep.subr.mxu0 0.0
    %785 = vmatpush1.msra.mxu0 0.0
    %786 = vmatprep.subr.mxu0 0.0
    %787 = vmatpush1.msra.mxu0 %v46
    %788 = vmatprep.subr.mxu0 0.0
    %789 = vmatpush2.msra.mxu0 0.0
    %790 = vmatprep.subr.mxu0 0.0
    %791 = vmatpush2.msra.mxu0 0.0
    %792 = vmatprep.subr.mxu0 0.0
    %793 = vmatpush2.msra.mxu0 0.0
    %794 = vmatprep.subr.mxu0 0.0
    %795 = vmatpush2.msra.mxu0 0.0
    %796 = vmatprep.subr.mxu0 0.0
    %797 = vmatpush2.msra.mxu0 0.0
    %798 = vmatprep.subr.mxu0 0.0
    %799 = vmatpush2.msra.mxu0 0.0
    %800 = vmatprep.subr.mxu0 0.0
    %801 = vmatpush2.msra.mxu0 0.0
    %802 = vmatprep.subr.mxu0 0.0
    %803 = vmatpush2.msra.mxu0 0.0
    %804 = vmatprep.subr.mxu0 0.0
    %805 = vmatpush2.msra.mxu0 0.0
    %806 = vmatprep.subr.mxu0 0.0
    %807 = vmatpush2.msra.mxu0 0.0
    %808 = vmatprep.subr.mxu0 0.0
    %809 = vmatpush2.msra.mxu0 0.0
    %810 = vmatprep.subr.mxu0 0.0
    %811 = vmatpush2.msra.mxu0 0.0
    %812 = vmatprep.subr.mxu0 0.0
    %813 = vmatpush2.msra.mxu0 0.0
    %814 = vmatprep.subr.mxu0 0.0
    %815 = vmatpush2.msra.mxu0 0.0
    %816 = vmatprep.subr.mxu0 0.0
    %817 = vmatpush2.msra.mxu0 0.0
    %818 = vmatprep.subr.mxu0 0.0
    %819 = vmatpush2.msra.mxu0 0.0
    %820 = vmatprep.mubr.f32.mxu0 0.0
    %821 = vmatmul.mubr.f32.gmra.mxu0 %v754
    %v822 = vpop.f32.mrf.mxu0
    %v823 = vadd.f32 0.0, %v822
    %v824 = vpop.f32.mrf.mxu0
    %825 = vdwg.mxu0
    %v826 = vsel %vm459, %v667, 0
    %828 = vmatprep.subr.mxu0 0.0
    %829 = vmatpush1.msra.mxu0 0.0
    %830 = vmatprep.subr.mxu0 0.0
    %831 = vmatpush1.msra.mxu0 0.0
    %832 = vmatprep.subr.mxu0 0.0
    %833 = vmatpush1.msra.mxu0 0.0
    %834 = vmatprep.subr.mxu0 0.0
    %835 = vmatpush1.msra.mxu0 0.0
    %836 = vmatprep.subr.mxu0 0.0
    %837 = vmatpush1.msra.mxu0 0.0
    %838 = vmatprep.subr.mxu0 0.0
    %839 = vmatpush1.msra.mxu0 0.0
    %840 = vmatprep.subr.mxu0 0.0
    %841 = vmatpush1.msra.mxu0 0.0
    %842 = vmatprep.subr.mxu0 0.0
    %843 = vmatpush1.msra.mxu0 0.0
    %844 = vmatprep.subr.mxu0 0.0
    %845 = vmatpush1.msra.mxu0 0.0
    %846 = vmatprep.subr.mxu0 0.0
    %847 = vmatpush1.msra.mxu0 0.0
    %848 = vmatprep.subr.mxu0 0.0
    %849 = vmatpush1.msra.mxu0 0.0
    %850 = vmatprep.subr.mxu0 0.0
    %851 = vmatpush1.msra.mxu0 0.0
    %852 = vmatprep.subr.mxu0 0.0
    %853 = vmatpush1.msra.mxu0 0.0
    %854 = vmatprep.subr.mxu0 0.0
    %855 = vmatpush1.msra.mxu0 0.0
    %856 = vmatprep.subr.mxu0 0.0
    %857 = vmatpush1.msra.mxu0 0.0
    %858 = vmatprep.subr.mxu0 0.0
    %859 = vmatpush1.msra.mxu0 %v47
    %860 = vmatprep.subr.mxu0 0.0
    %861 = vmatpush2.msra.mxu0 0.0
    %862 = vmatprep.subr.mxu0 0.0
    %863 = vmatpush2.msra.mxu0 0.0
    %864 = vmatprep.subr.mxu0 0.0
    %865 = vmatpush2.msra.mxu0 0.0
    %866 = vmatprep.subr.mxu0 0.0
    %867 = vmatpush2.msra.mxu0 0.0
    %868 = vmatprep.subr.mxu0 0.0
    %869 = vmatpush2.msra.mxu0 0.0
    %870 = vmatprep.subr.mxu0 0.0
    %871 = vmatpush2.msra.mxu0 0.0
    %872 = vmatprep.subr.mxu0 0.0
    %873 = vmatpush2.msra.mxu0 0.0
    %874 = vmatprep.subr.mxu0 0.0
    %875 = vmatpush2.msra.mxu0 0.0
    %876 = vmatprep.subr.mxu0 0.0
    %877 = vmatpush2.msra.mxu0 0.0
    %878 = vmatprep.subr.mxu0 0.0
    %879 = vmatpush2.msra.mxu0 0.0
    %880 = vmatprep.subr.mxu0 0.0
    %881 = vmatpush2.msra.mxu0 0.0
    %882 = vmatprep.subr.mxu0 0.0
    %883 = vmatpush2.msra.mxu0 0.0
    %884 = vmatprep.subr.mxu0 0.0
    %885 = vmatpush2.msra.mxu0 0.0
    %886 = vmatprep.subr.mxu0 0.0
    %887 = vmatpush2.msra.mxu0 0.0
    %888 = vmatprep.subr.mxu0 0.0
    %889 = vmatpush2.msra.mxu0 0.0
    %890 = vmatprep.subr.mxu0 0.0
    %891 = vmatpush2.msra.mxu0 0.0
    %892 = vmatprep.mubr.f32.mxu0 0.0
    %893 = vmatmul.mubr.f32.gmra.mxu0 %v826
    %v894 = vpop.f32.mrf.mxu0
    %v895 = vadd.f32 0.0, %v894
    %v896 = vpop.f32.mrf.mxu0
    %897 = vdwg.mxu0
    %v898 = vsel %vm459, %v671, 0
    %900 = vmatprep.subr.mxu0 0.0
    %901 = vmatpush1.msra.mxu0 0.0
    %902 = vmatprep.subr.mxu0 0.0
    %903 = vmatpush1.msra.mxu0 0.0
    %904 = vmatprep.subr.mxu0 0.0
    %905 = vmatpush1.msra.mxu0 0.0
    %906 = vmatprep.subr.mxu0 0.0
    %907 = vmatpush1.msra.mxu0 0.0
    %908 = vmatprep.subr.mxu0 0.0
    %909 = vmatpush1.msra.mxu0 0.0
    %910 = vmatprep.subr.mxu0 0.0
    %911 = vmatpush1.msra.mxu0 0.0
    %912 = vmatprep.subr.mxu0 0.0
    %913 = vmatpush1.msra.mxu0 0.0
    %914 = vmatprep.subr.mxu0 0.0
    %915 = vmatpush1.msra.mxu0 0.0
    %916 = vmatprep.subr.mxu0 0.0
    %917 = vmatpush1.msra.mxu0 0.0
    %918 = vmatprep.subr.mxu0 0.0
    %919 = vmatpush1.msra.mxu0 0.0
    %920 = vmatprep.subr.mxu0 0.0
    %921 = vmatpush1.msra.mxu0 0.0
    %922 = vmatprep.subr.mxu0 0.0
    %923 = vmatpush1.msra.mxu0 0.0
    %924 = vmatprep.subr.mxu0 0.0
    %925 = vmatpush1.msra.mxu0 0.0
    %926 = vmatprep.subr.mxu0 0.0
    %927 = vmatpush1.msra.mxu0 0.0
    %928 = vmatprep.subr.mxu0 0.0
    %929 = vmatpush1.msra.mxu0 0.0
    %930 = vmatprep.subr.mxu0 0.0
    %931 = vmatpush1.msra.mxu0 %v48
    %932 = vmatprep.subr.mxu0 0.0
    %933 = vmatpush2.msra.mxu0 0.0
    %934 = vmatprep.subr.mxu0 0.0
    %935 = vmatpush2.msra.mxu0 0.0
    %936 = vmatprep.subr.mxu0 0.0
    %937 = vmatpush2.msra.mxu0 0.0
    %938 = vmatprep.subr.mxu0 0.0
    %939 = vmatpush2.msra.mxu0 0.0
    %940 = vmatprep.subr.mxu0 0.0
    %941 = vmatpush2.msra.mxu0 0.0
    %942 = vmatprep.subr.mxu0 0.0
    %943 = vmatpush2.msra.mxu0 0.0
    %944 = vmatprep.subr.mxu0 0.0
    %945 = vmatpush2.msra.mxu0 0.0
    %946 = vmatprep.subr.mxu0 0.0
    %947 = vmatpush2.msra.mxu0 0.0
    %948 = vmatprep.subr.mxu0 0.0
    %949 = vmatpush2.msra.mxu0 0.0
    %950 = vmatprep.subr.mxu0 0.0
    %951 = vmatpush2.msra.mxu0 0.0
    %952 = vmatprep.subr.mxu0 0.0
    %953 = vmatpush2.msra.mxu0 0.0
    %954 = vmatprep.subr.mxu0 0.0
    %955 = vmatpush2.msra.mxu0 0.0
    %956 = vmatprep.subr.mxu0 0.0
    %957 = vmatpush2.msra.mxu0 0.0
    %958 = vmatprep.subr.mxu0 0.0
    %959 = vmatpush2.msra.mxu0 0.0
    %960 = vmatprep.subr.mxu0 0.0
    %961 = vmatpush2.msra.mxu0 0.0
    %962 = vmatprep.subr.mxu0 0.0
    %963 = vmatpush2.msra.mxu0 0.0
    %964 = vmatprep.mubr.f32.mxu0 0.0
    %965 = vmatmul.mubr.f32.gmra.mxu0 %v898
    %v966 = vpop.f32.mrf.mxu0
    %v967 = vadd.f32 0.0, %v966
    %v968 = vpop.f32.mrf.mxu0
    %969 = vdwg.mxu0
    %v970 = vsel %vm459, %v675, 0
    %972 = vmatprep.subr.mxu0 0.0
    %973 = vmatpush1.msra.mxu0 0.0
    %974 = vmatprep.subr.mxu0 0.0
    %975 = vmatpush1.msra.mxu0 0.0
    %976 = vmatprep.subr.mxu0 0.0
    %977 = vmatpush1.msra.mxu0 0.0
    %978 = vmatprep.subr.mxu0 0.0
    %979 = vmatpush1.msra.mxu0 0.0
    %980 = vmatprep.subr.mxu0 0.0
    %981 = vmatpush1.msra.mxu0 0.0
    %982 = vmatprep.subr.mxu0 0.0
    %983 = vmatpush1.msra.mxu0 0.0
    %984 = vmatprep.subr.mxu0 0.0
    %985 = vmatpush1.msra.mxu0 0.0
    %986 = vmatprep.subr.mxu0 0.0
    %987 = vmatpush1.msra.mxu0 0.0
    %988 = vmatprep.subr.mxu0 0.0
    %989 = vmatpush1.msra.mxu0 0.0
    %990 = vmatprep.subr.mxu0 0.0
    %991 = vmatpush1.msra.mxu0 0.0
    %992 = vmatprep.subr.mxu0 0.0
    %993 = vmatpush1.msra.mxu0 0.0
    %994 = vmatprep.subr.mxu0 0.0
    %995 = vmatpush1.msra.mxu0 0.0
    %996 = vmatprep.subr.mxu0 0.0
    %997 = vmatpush1.msra.mxu0 0.0
    %998 = vmatprep.subr.mxu0 0.0
    %999 = vmatpush1.msra.mxu0 0.0
    %1000 = vmatprep.subr.mxu0 0.0
    %1001 = vmatpush1.msra.mxu0 0.0
    %1002 = vmatprep.subr.mxu0 0.0
    %1003 = vmatpush1.msra.mxu0 %v49
    %1004 = vmatprep.subr.mxu0 0.0
    %1005 = vmatpush2.msra.mxu0 0.0
    %1006 = vmatprep.subr.mxu0 0.0
    %1007 = vmatpush2.msra.mxu0 0.0
    %1008 = vmatprep.subr.mxu0 0.0
    %1009 = vmatpush2.msra.mxu0 0.0
    %1010 = vmatprep.subr.mxu0 0.0
    %1011 = vmatpush2.msra.mxu0 0.0
    %1012 = vmatprep.subr.mxu0 0.0
    %1013 = vmatpush2.msra.mxu0 0.0
    %1014 = vmatprep.subr.mxu0 0.0
    %1015 = vmatpush2.msra.mxu0 0.0
    %1016 = vmatprep.subr.mxu0 0.0
    %1017 = vmatpush2.msra.mxu0 0.0
    %1018 = vmatprep.subr.mxu0 0.0
    %1019 = vmatpush2.msra.mxu0 0.0
    %1020 = vmatprep.subr.mxu0 0.0
    %1021 = vmatpush2.msra.mxu0 0.0
    %1022 = vmatprep.subr.mxu0 0.0
    %1023 = vmatpush2.msra.mxu0 0.0
    %1024 = vmatprep.subr.mxu0 0.0
    %1025 = vmatpush2.msra.mxu0 0.0
    %1026 = vmatprep.subr.mxu0 0.0
    %1027 = vmatpush2.msra.mxu0 0.0
    %1028 = vmatprep.subr.mxu0 0.0
    %1029 = vmatpush2.msra.mxu0 0.0
    %1030 = vmatprep.subr.mxu0 0.0
    %1031 = vmatpush2.msra.mxu0 0.0
    %1032 = vmatprep.subr.mxu0 0.0
    %1033 = vmatpush2.msra.mxu0 0.0
    %1034 = vmatprep.subr.mxu0 0.0
    %1035 = vmatpush2.msra.mxu0 0.0
    %1036 = vmatprep.mubr.f32.mxu0 0.0
    %1037 = vmatmul.mubr.f32.gmra.mxu0 %v970
    %v1038 = vpop.f32.mrf.mxu0
    %v1039 = vadd.f32 0.0, %v1038
    %v1040 = vpop.f32.mrf.mxu0
    %1041 = vdwg.mxu0
    %v1042 = vsel %vm459, %v679, 0
    %1044 = vmatprep.subr.mxu0 0.0
    %1045 = vmatpush1.msra.mxu0 0.0
    %1046 = vmatprep.subr.mxu0 0.0
    %1047 = vmatpush1.msra.mxu0 0.0
    %1048 = vmatprep.subr.mxu0 0.0
    %1049 = vmatpush1.msra.mxu0 0.0
    %1050 = vmatprep.subr.mxu0 0.0
    %1051 = vmatpush1.msra.mxu0 0.0
    %1052 = vmatprep.subr.mxu0 0.0
    %1053 = vmatpush1.msra.mxu0 0.0
    %1054 = vmatprep.subr.mxu0 0.0
    %1055 = vmatpush1.msra.mxu0 0.0
    %1056 = vmatprep.subr.mxu0 0.0
    %1057 = vmatpush1.msra.mxu0 0.0
    %1058 = vmatprep.subr.mxu0 0.0
    %1059 = vmatpush1.msra.mxu0 0.0
    %1060 = vmatprep.subr.mxu0 0.0
    %1061 = vmatpush1.msra.mxu0 0.0
    %1062 = vmatprep.subr.mxu0 0.0
    %1063 = vmatpush1.msra.mxu0 0.0
    %1064 = vmatprep.subr.mxu0 0.0
    %1065 = vmatpush1.msra.mxu0 0.0
    %1066 = vmatprep.subr.mxu0 0.0
    %1067 = vmatpush1.msra.mxu0 0.0
    %1068 = vmatprep.subr.mxu0 0.0
    %1069 = vmatpush1.msra.mxu0 0.0
    %1070 = vmatprep.subr.mxu0 0.0
    %1071 = vmatpush1.msra.mxu0 0.0
    %1072 = vmatprep.subr.mxu0 0.0
    %1073 = vmatpush1.msra.mxu0 0.0
    %1074 = vmatprep.subr.mxu0 0.0
    %1075 = vmatpush1.msra.mxu0 %v50
    %1076 = vmatprep.subr.mxu0 0.0
    %1077 = vmatpush2.msra.mxu0 0.0
    %1078 = vmatprep.subr.mxu0 0.0
    %1079 = vmatpush2.msra.mxu0 0.0
    %1080 = vmatprep.subr.mxu0 0.0
    %1081 = vmatpush2.msra.mxu0 0.0
    %1082 = vmatprep.subr.mxu0 0.0
    %1083 = vmatpush2.msra.mxu0 0.0
    %1084 = vmatprep.subr.mxu0 0.0
    %1085 = vmatpush2.msra.mxu0 0.0
    %1086 = vmatprep.subr.mxu0 0.0
    %1087 = vmatpush2.msra.mxu0 0.0
    %1088 = vmatprep.subr.mxu0 0.0
    %1089 = vmatpush2.msra.mxu0 0.0
    %1090 = vmatprep.subr.mxu0 0.0
    %1091 = vmatpush2.msra.mxu0 0.0
    %1092 = vmatprep.subr.mxu0 0.0
    %1093 = vmatpush2.msra.mxu0 0.0
    %1094 = vmatprep.subr.mxu0 0.0
    %1095 = vmatpush2.msra.mxu0 0.0
    %1096 = vmatprep.subr.mxu0 0.0
    %1097 = vmatpush2.msra.mxu0 0.0
    %1098 = vmatprep.subr.mxu0 0.0
    %1099 = vmatpush2.msra.mxu0 0.0
    %1100 = vmatprep.subr.mxu0 0.0
    %1101 = vmatpush2.msra.mxu0 0.0
    %1102 = vmatprep.subr.mxu0 0.0
    %1103 = vmatpush2.msra.mxu0 0.0
    %1104 = vmatprep.subr.mxu0 0.0
    %1105 = vmatpush2.msra.mxu0 0.0
    %1106 = vmatprep.subr.mxu0 0.0
    %1107 = vmatpush2.msra.mxu0 0.0
    %1108 = vmatprep.mubr.f32.mxu0 0.0
    %1109 = vmatmul.mubr.f32.gmra.mxu0 %v1042
    %v1110 = vpop.f32.mrf.mxu0
    %v1111 = vadd.f32 0.0, %v1110
    %v1112 = vpop.f32.mrf.mxu0
    %1113 = vdwg.mxu0
    %v1114 = vsel %vm459, %v683, 0
    %1116 = vmatprep.subr.mxu0 0.0
    %1117 = vmatpush1.msra.mxu0 0.0
    %1118 = vmatprep.subr.mxu0 0.0
    %1119 = vmatpush1.msra.mxu0 0.0
    %1120 = vmatprep.subr.mxu0 0.0
    %1121 = vmatpush1.msra.mxu0 0.0
    %1122 = vmatprep.subr.mxu0 0.0
    %1123 = vmatpush1.msra.mxu0 0.0
    %1124 = vmatprep.subr.mxu0 0.0
    %1125 = vmatpush1.msra.mxu0 0.0
    %1126 = vmatprep.subr.mxu0 0.0
    %1127 = vmatpush1.msra.mxu0 0.0
    %1128 = vmatprep.subr.mxu0 0.0
    %1129 = vmatpush1.msra.mxu0 0.0
    %1130 = vmatprep.subr.mxu0 0.0
    %1131 = vmatpush1.msra.mxu0 0.0
    %1132 = vmatprep.subr.mxu0 0.0
    %1133 = vmatpush1.msra.mxu0 0.0
    %1134 = vmatprep.subr.mxu0 0.0
    %1135 = vmatpush1.msra.mxu0 0.0
    %1136 = vmatprep.subr.mxu0 0.0
    %1137 = vmatpush1.msra.mxu0 0.0
    %1138 = vmatprep.subr.mxu0 0.0
    %1139 = vmatpush1.msra.mxu0 0.0
    %1140 = vmatprep.subr.mxu0 0.0
    %1141 = vmatpush1.msra.mxu0 0.0
    %1142 = vmatprep.subr.mxu0 0.0
    %1143 = vmatpush1.msra.mxu0 0.0
    %1144 = vmatprep.subr.mxu0 0.0
    %1145 = vmatpush1.msra.mxu0 0.0
    %1146 = vmatprep.subr.mxu0 0.0
    %1147 = vmatpush1.msra.mxu0 %v51
    %1148 = vmatprep.subr.mxu0 0.0
    %1149 = vmatpush2.msra.mxu0 0.0
    %1150 = vmatprep.subr.mxu0 0.0
    %1151 = vmatpush2.msra.mxu0 0.0
    %1152 = vmatprep.subr.mxu0 0.0
    %1153 = vmatpush2.msra.mxu0 0.0
    %1154 = vmatprep.subr.mxu0 0.0
    %1155 = vmatpush2.msra.mxu0 0.0
    %1156 = vmatprep.subr.mxu0 0.0
    %1157 = vmatpush2.msra.mxu0 0.0
    %1158 = vmatprep.subr.mxu0 0.0
    %1159 = vmatpush2.msra.mxu0 0.0
    %1160 = vmatprep.subr.mxu0 0.0
    %1161 = vmatpush2.msra.mxu0 0.0
    %1162 = vmatprep.subr.mxu0 0.0
    %1163 = vmatpush2.msra.mxu0 0.0
    %1164 = vmatprep.subr.mxu0 0.0
    %1165 = vmatpush2.msra.mxu0 0.0
    %1166 = vmatprep.subr.mxu0 0.0
    %1167 = vmatpush2.msra.mxu0 0.0
    %1168 = vmatprep.subr.mxu0 0.0
    %1169 = vmatpush2.msra.mxu0 0.0
    %1170 = vmatprep.subr.mxu0 0.0
    %1171 = vmatpush2.msra.mxu0 0.0
    %1172 = vmatprep.subr.mxu0 0.0
    %1173 = vmatpush2.msra.mxu0 0.0
    %1174 = vmatprep.subr.mxu0 0.0
    %1175 = vmatpush2.msra.mxu0 0.0
    %1176 = vmatprep.subr.mxu0 0.0
    %1177 = vmatpush2.msra.mxu0 0.0
    %1178 = vmatprep.subr.mxu0 0.0
    %1179 = vmatpush2.msra.mxu0 0.0
    %1180 = vmatprep.mubr.f32.mxu0 0.0
    %1181 = vmatmul.mubr.f32.gmra.mxu0 %v1114
    %v1182 = vpop.f32.mrf.mxu0
    %v1183 = vadd.f32 0.0, %v1182
    %v1184 = vpop.f32.mrf.mxu0
    %1185 = vdwg.mxu0
    %v1186 = vsel %vm459, %v687, 0
    %1188 = vmatprep.subr.mxu0 0.0
    %1189 = vmatpush1.msra.mxu0 0.0
    %1190 = vmatprep.subr.mxu0 0.0
    %1191 = vmatpush1.msra.mxu0 0.0
    %1192 = vmatprep.subr.mxu0 0.0
    %1193 = vmatpush1.msra.mxu0 0.0
    %1194 = vmatprep.subr.mxu0 0.0
    %1195 = vmatpush1.msra.mxu0 0.0
    %1196 = vmatprep.subr.mxu0 0.0
    %1197 = vmatpush1.msra.mxu0 0.0
    %1198 = vmatprep.subr.mxu0 0.0
    %1199 = vmatpush1.msra.mxu0 0.0
    %1200 = vmatprep.subr.mxu0 0.0
    %1201 = vmatpush1.msra.mxu0 0.0
    %1202 = vmatprep.subr.mxu0 0.0
    %1203 = vmatpush1.msra.mxu0 0.0
    %1204 = vmatprep.subr.mxu0 0.0
    %1205 = vmatpush1.msra.mxu0 0.0
    %1206 = vmatprep.subr.mxu0 0.0
    %1207 = vmatpush1.msra.mxu0 0.0
    %1208 = vmatprep.subr.mxu0 0.0
    %1209 = vmatpush1.msra.mxu0 0.0
    %1210 = vmatprep.subr.mxu0 0.0
    %1211 = vmatpush1.msra.mxu0 0.0
    %1212 = vmatprep.subr.mxu0 0.0
    %1213 = vmatpush1.msra.mxu0 0.0
    %1214 = vmatprep.subr.mxu0 0.0
    %1215 = vmatpush1.msra.mxu0 0.0
    %1216 = vmatprep.subr.mxu0 0.0
    %1217 = vmatpush1.msra.mxu0 0.0
    %1218 = vmatprep.subr.mxu0 0.0
    %1219 = vmatpush1.msra.mxu0 %v52
    %1220 = vmatprep.subr.mxu0 0.0
    %1221 = vmatpush2.msra.mxu0 0.0
    %1222 = vmatprep.subr.mxu0 0.0
    %1223 = vmatpush2.msra.mxu0 0.0
    %1224 = vmatprep.subr.mxu0 0.0
    %1225 = vmatpush2.msra.mxu0 0.0
    %1226 = vmatprep.subr.mxu0 0.0
    %1227 = vmatpush2.msra.mxu0 0.0
    %1228 = vmatprep.subr.mxu0 0.0
    %1229 = vmatpush2.msra.mxu0 0.0
    %1230 = vmatprep.subr.mxu0 0.0
    %1231 = vmatpush2.msra.mxu0 0.0
    %1232 = vmatprep.subr.mxu0 0.0
    %1233 = vmatpush2.msra.mxu0 0.0
    %1234 = vmatprep.subr.mxu0 0.0
    %1235 = vmatpush2.msra.mxu0 0.0
    %1236 = vmatprep.subr.mxu0 0.0
    %1237 = vmatpush2.msra.mxu0 0.0
    %1238 = vmatprep.subr.mxu0 0.0
    %1239 = vmatpush2.msra.mxu0 0.0
    %1240 = vmatprep.subr.mxu0 0.0
    %1241 = vmatpush2.msra.mxu0 0.0
    %1242 = vmatprep.subr.mxu0 0.0
    %1243 = vmatpush2.msra.mxu0 0.0
    %1244 = vmatprep.subr.mxu0 0.0
    %1245 = vmatpush2.msra.mxu0 0.0
    %1246 = vmatprep.subr.mxu0 0.0
    %1247 = vmatpush2.msra.mxu0 0.0
    %1248 = vmatprep.subr.mxu0 0.0
    %1249 = vmatpush2.msra.mxu0 0.0
    %1250 = vmatprep.subr.mxu0 0.0
    %1251 = vmatpush2.msra.mxu0 0.0
    %1252 = vmatprep.mubr.f32.mxu0 0.0
    %1253 = vmatmul.mubr.f32.gmra.mxu0 %v1186
    %v1254 = vpop.f32.mrf.mxu0
    %v1255 = vadd.f32 0.0, %v1254
    %v1256 = vpop.f32.mrf.mxu0
    %1257 = vdwg.mxu0
    %v1258 = vsel %vm459, %v691, 0
    %1260 = vmatprep.subr.mxu0 0.0
    %1261 = vmatpush1.msra.mxu0 0.0
    %1262 = vmatprep.subr.mxu0 0.0
    %1263 = vmatpush1.msra.mxu0 0.0
    %1264 = vmatprep.subr.mxu0 0.0
    %1265 = vmatpush1.msra.mxu0 0.0
    %1266 = vmatprep.subr.mxu0 0.0
    %1267 = vmatpush1.msra.mxu0 0.0
    %1268 = vmatprep.subr.mxu0 0.0
    %1269 = vmatpush1.msra.mxu0 0.0
    %1270 = vmatprep.subr.mxu0 0.0
    %1271 = vmatpush1.msra.mxu0 0.0
    %1272 = vmatprep.subr.mxu0 0.0
    %1273 = vmatpush1.msra.mxu0 0.0
    %1274 = vmatprep.subr.mxu0 0.0
    %1275 = vmatpush1.msra.mxu0 0.0
    %1276 = vmatprep.subr.mxu0 0.0
    %1277 = vmatpush1.msra.mxu0 0.0
    %1278 = vmatprep.subr.mxu0 0.0
    %1279 = vmatpush1.msra.mxu0 0.0
    %1280 = vmatprep.subr.mxu0 0.0
    %1281 = vmatpush1.msra.mxu0 0.0
    %1282 = vmatprep.subr.mxu0 0.0
    %1283 = vmatpush1.msra.mxu0 0.0
    %1284 = vmatprep.subr.mxu0 0.0
    %1285 = vmatpush1.msra.mxu0 0.0
    %1286 = vmatprep.subr.mxu0 0.0
    %1287 = vmatpush1.msra.mxu0 0.0
    %1288 = vmatprep.subr.mxu0 0.0
    %1289 = vmatpush1.msra.mxu0 0.0
    %1290 = vmatprep.subr.mxu0 0.0
    %1291 = vmatpush1.msra.mxu0 %v53
    %1292 = vmatprep.subr.mxu0 0.0
    %1293 = vmatpush2.msra.mxu0 0.0
    %1294 = vmatprep.subr.mxu0 0.0
    %1295 = vmatpush2.msra.mxu0 0.0
    %1296 = vmatprep.subr.mxu0 0.0
    %1297 = vmatpush2.msra.mxu0 0.0
    %1298 = vmatprep.subr.mxu0 0.0
    %1299 = vmatpush2.msra.mxu0 0.0
    %1300 = vmatprep.subr.mxu0 0.0
    %1301 = vmatpush2.msra.mxu0 0.0
    %1302 = vmatprep.subr.mxu0 0.0
    %1303 = vmatpush2.msra.mxu0 0.0
    %1304 = vmatprep.subr.mxu0 0.0
    %1305 = vmatpush2.msra.mxu0 0.0
    %1306 = vmatprep.subr.mxu0 0.0
    %1307 = vmatpush2.msra.mxu0 0.0
    %1308 = vmatprep.subr.mxu0 0.0
    %1309 = vmatpush2.msra.mxu0 0.0
    %1310 = vmatprep.subr.mxu0 0.0
    %1311 = vmatpush2.msra.mxu0 0.0
    %1312 = vmatprep.subr.mxu0 0.0
    %1313 = vmatpush2.msra.mxu0 0.0
    %1314 = vmatprep.subr.mxu0 0.0
    %1315 = vmatpush2.msra.mxu0 0.0
    %1316 = vmatprep.subr.mxu0 0.0
    %1317 = vmatpush2.msra.mxu0 0.0
    %1318 = vmatprep.subr.mxu0 0.0
    %1319 = vmatpush2.msra.mxu0 0.0
    %1320 = vmatprep.subr.mxu0 0.0
    %1321 = vmatpush2.msra.mxu0 0.0
    %1322 = vmatprep.subr.mxu0 0.0
    %1323 = vmatpush2.msra.mxu0 0.0
    %1324 = vmatprep.mubr.f32.mxu0 0.0
    %1325 = vmatmul.mubr.f32.gmra.mxu0 %v1258
    %v1326 = vpop.f32.mrf.mxu0
    %v1327 = vadd.f32 0.0, %v1326
    %v1328 = vpop.f32.mrf.mxu0
    %1329 = vdwg.mxu0
    %v1330 = vsel %vm459, %v695, 0
    %1332 = vmatprep.subr.mxu0 0.0
    %1333 = vmatpush1.msra.mxu0 0.0
    %1334 = vmatprep.subr.mxu0 0.0
    %1335 = vmatpush1.msra.mxu0 0.0
    %1336 = vmatprep.subr.mxu0 0.0
    %1337 = vmatpush1.msra.mxu0 0.0
    %1338 = vmatprep.subr.mxu0 0.0
    %1339 = vmatpush1.msra.mxu0 0.0
    %1340 = vmatprep.subr.mxu0 0.0
    %1341 = vmatpush1.msra.mxu0 0.0
    %1342 = vmatprep.subr.mxu0 0.0
    %1343 = vmatpush1.msra.mxu0 0.0
    %1344 = vmatprep.subr.mxu0 0.0
    %1345 = vmatpush1.msra.mxu0 0.0
    %1346 = vmatprep.subr.mxu0 0.0
    %1347 = vmatpush1.msra.mxu0 0.0
    %1348 = vmatprep.subr.mxu0 0.0
    %1349 = vmatpush1.msra.mxu0 0.0
    %1350 = vmatprep.subr.mxu0 0.0
    %1351 = vmatpush1.msra.mxu0 0.0
    %1352 = vmatprep.subr.mxu0 0.0
    %1353 = vmatpush1.msra.mxu0 0.0
    %1354 = vmatprep.subr.mxu0 0.0
    %1355 = vmatpush1.msra.mxu0 0.0
    %1356 = vmatprep.subr.mxu0 0.0
    %1357 = vmatpush1.msra.mxu0 0.0
    %1358 = vmatprep.subr.mxu0 0.0
    %1359 = vmatpush1.msra.mxu0 0.0
    %1360 = vmatprep.subr.mxu0 0.0
    %1361 = vmatpush1.msra.mxu0 0.0
    %1362 = vmatprep.subr.mxu0 0.0
    %1363 = vmatpush1.msra.mxu0 %v54
    %1364 = vmatprep.subr.mxu0 0.0
    %1365 = vmatpush2.msra.mxu0 0.0
    %1366 = vmatprep.subr.mxu0 0.0
    %1367 = vmatpush2.msra.mxu0 0.0
    %1368 = vmatprep.subr.mxu0 0.0
    %1369 = vmatpush2.msra.mxu0 0.0
    %1370 = vmatprep.subr.mxu0 0.0
    %1371 = vmatpush2.msra.mxu0 0.0
    %1372 = vmatprep.subr.mxu0 0.0
    %1373 = vmatpush2.msra.mxu0 0.0
    %1374 = vmatprep.subr.mxu0 0.0
    %1375 = vmatpush2.msra.mxu0 0.0
    %1376 = vmatprep.subr.mxu0 0.0
    %1377 = vmatpush2.msra.mxu0 0.0
    %1378 = vmatprep.subr.mxu0 0.0
    %1379 = vmatpush2.msra.mxu0 0.0
    %1380 = vmatprep.subr.mxu0 0.0
    %1381 = vmatpush2.msra.mxu0 0.0
    %1382 = vmatprep.subr.mxu0 0.0
    %1383 = vmatpush2.msra.mxu0 0.0
    %1384 = vmatprep.subr.mxu0 0.0
    %1385 = vmatpush2.msra.mxu0 0.0
    %1386 = vmatprep.subr.mxu0 0.0
    %1387 = vmatpush2.msra.mxu0 0.0
    %1388 = vmatprep.subr.mxu0 0.0
    %1389 = vmatpush2.msra.mxu0 0.0
    %1390 = vmatprep.subr.mxu0 0.0
    %1391 = vmatpush2.msra.mxu0 0.0
    %1392 = vmatprep.subr.mxu0 0.0
    %1393 = vmatpush2.msra.mxu0 0.0
    %1394 = vmatprep.subr.mxu0 0.0
    %1395 = vmatpush2.msra.mxu0 0.0
    %1396 = vmatprep.mubr.f32.mxu0 0.0
    %1397 = vmatmul.mubr.f32.gmra.mxu0 %v1330
    %v1398 = vpop.f32.mrf.mxu0
    %v1399 = vadd.f32 0.0, %v1398
    %v1400 = vpop.f32.mrf.mxu0
    %1401 = vdwg.mxu0
    %v1402 = vsel %vm459, %v699, 0
    %1404 = vmatprep.subr.mxu0 0.0
    %1405 = vmatpush1.msra.mxu0 0.0
    %1406 = vmatprep.subr.mxu0 0.0
    %1407 = vmatpush1.msra.mxu0 0.0
    %1408 = vmatprep.subr.mxu0 0.0
    %1409 = vmatpush1.msra.mxu0 0.0
    %1410 = vmatprep.subr.mxu0 0.0
    %1411 = vmatpush1.msra.mxu0 0.0
    %1412 = vmatprep.subr.mxu0 0.0
    %1413 = vmatpush1.msra.mxu0 0.0
    %1414 = vmatprep.subr.mxu0 0.0
    %1415 = vmatpush1.msra.mxu0 0.0
    %1416 = vmatprep.subr.mxu0 0.0
    %1417 = vmatpush1.msra.mxu0 0.0
    %1418 = vmatprep.subr.mxu0 0.0
    %1419 = vmatpush1.msra.mxu0 0.0
    %1420 = vmatprep.subr.mxu0 0.0
    %1421 = vmatpush1.msra.mxu0 0.0
    %1422 = vmatprep.subr.mxu0 0.0
    %1423 = vmatpush1.msra.mxu0 0.0
    %1424 = vmatprep.subr.mxu0 0.0
    %1425 = vmatpush1.msra.mxu0 0.0
    %1426 = vmatprep.subr.mxu0 0.0
    %1427 = vmatpush1.msra.mxu0 0.0
    %1428 = vmatprep.subr.mxu0 0.0
    %1429 = vmatpush1.msra.mxu0 0.0
    %1430 = vmatprep.subr.mxu0 0.0
    %1431 = vmatpush1.msra.mxu0 0.0
    %1432 = vmatprep.subr.mxu0 0.0
    %1433 = vmatpush1.msra.mxu0 0.0
    %1434 = vmatprep.subr.mxu0 0.0
    %1435 = vmatpush1.msra.mxu0 %v55
    %1436 = vmatprep.subr.mxu0 0.0
    %1437 = vmatpush2.msra.mxu0 0.0
    %1438 = vmatprep.subr.mxu0 0.0
    %1439 = vmatpush2.msra.mxu0 0.0
    %1440 = vmatprep.subr.mxu0 0.0
    %1441 = vmatpush2.msra.mxu0 0.0
    %1442 = vmatprep.subr.mxu0 0.0
    %1443 = vmatpush2.msra.mxu0 0.0
    %1444 = vmatprep.subr.mxu0 0.0
    %1445 = vmatpush2.msra.mxu0 0.0
    %1446 = vmatprep.subr.mxu0 0.0
    %1447 = vmatpush2.msra.mxu0 0.0
    %1448 = vmatprep.subr.mxu0 0.0
    %1449 = vmatpush2.msra.mxu0 0.0
    %1450 = vmatprep.subr.mxu0 0.0
    %1451 = vmatpush2.msra.mxu0 0.0
    %1452 = vmatprep.subr.mxu0 0.0
    %1453 = vmatpush2.msra.mxu0 0.0
    %1454 = vmatprep.subr.mxu0 0.0
    %1455 = vmatpush2.msra.mxu0 0.0
    %1456 = vmatprep.subr.mxu0 0.0
    %1457 = vmatpush2.msra.mxu0 0.0
    %1458 = vmatprep.subr.mxu0 0.0
    %1459 = vmatpush2.msra.mxu0 0.0
    %1460 = vmatprep.subr.mxu0 0.0
    %1461 = vmatpush2.msra.mxu0 0.0
    %1462 = vmatprep.subr.mxu0 0.0
    %1463 = vmatpush2.msra.mxu0 0.0
    %1464 = vmatprep.subr.mxu0 0.0
    %1465 = vmatpush2.msra.mxu0 0.0
    %1466 = vmatprep.subr.mxu0 0.0
    %1467 = vmatpush2.msra.mxu0 0.0
    %1468 = vmatprep.mubr.f32.mxu0 0.0
    %1469 = vmatmul.mubr.f32.gmra.mxu0 %v1402
    %v1470 = vpop.f32.mrf.mxu0
    %v1471 = vadd.f32 0.0, %v1470
    %v1472 = vpop.f32.mrf.mxu0
    %1473 = vdwg.mxu0
    %v1474 = vsel %vm459, %v703, 0
    %1476 = vmatprep.subr.mxu0 0.0
    %1477 = vmatpush1.msra.mxu0 0.0
    %1478 = vmatprep.subr.mxu0 0.0
    %1479 = vmatpush1.msra.mxu0 0.0
    %1480 = vmatprep.subr.mxu0 0.0
    %1481 = vmatpush1.msra.mxu0 0.0
    %1482 = vmatprep.subr.mxu0 0.0
    %1483 = vmatpush1.msra.mxu0 0.0
    %1484 = vmatprep.subr.mxu0 0.0
    %1485 = vmatpush1.msra.mxu0 0.0
    %1486 = vmatprep.subr.mxu0 0.0
    %1487 = vmatpush1.msra.mxu0 0.0
    %1488 = vmatprep.subr.mxu0 0.0
    %1489 = vmatpush1.msra.mxu0 0.0
    %1490 = vmatprep.subr.mxu0 0.0
    %1491 = vmatpush1.msra.mxu0 0.0
    %1492 = vmatprep.subr.mxu0 0.0
    %1493 = vmatpush1.msra.mxu0 0.0
    %1494 = vmatprep.subr.mxu0 0.0
    %1495 = vmatpush1.msra.mxu0 0.0
    %1496 = vmatprep.subr.mxu0 0.0
    %1497 = vmatpush1.msra.mxu0 0.0
    %1498 = vmatprep.subr.mxu0 0.0
    %1499 = vmatpush1.msra.mxu0 0.0
    %1500 = vmatprep.subr.mxu0 0.0
    %1501 = vmatpush1.msra.mxu0 0.0
    %1502 = vmatprep.subr.mxu0 0.0
    %1503 = vmatpush1.msra.mxu0 0.0
    %1504 = vmatprep.subr.mxu0 0.0
    %1505 = vmatpush1.msra.mxu0 0.0
    %1506 = vmatprep.subr.mxu0 0.0
    %1507 = vmatpush1.msra.mxu0 %v56
    %1508 = vmatprep.subr.mxu0 0.0
    %1509 = vmatpush2.msra.mxu0 0.0
    %1510 = vmatprep.subr.mxu0 0.0
    %1511 = vmatpush2.msra.mxu0 0.0
    %1512 = vmatprep.subr.mxu0 0.0
    %1513 = vmatpush2.msra.mxu0 0.0
    %1514 = vmatprep.subr.mxu0 0.0
    %1515 = vmatpush2.msra.mxu0 0.0
    %1516 = vmatprep.subr.mxu0 0.0
    %1517 = vmatpush2.msra.mxu0 0.0
    %1518 = vmatprep.subr.mxu0 0.0
    %1519 = vmatpush2.msra.mxu0 0.0
    %1520 = vmatprep.subr.mxu0 0.0
    %1521 = vmatpush2.msra.mxu0 0.0
    %1522 = vmatprep.subr.mxu0 0.0
    %1523 = vmatpush2.msra.mxu0 0.0
    %1524 = vmatprep.subr.mxu0 0.0
    %1525 = vmatpush2.msra.mxu0 0.0
    %1526 = vmatprep.subr.mxu0 0.0
    %1527 = vmatpush2.msra.mxu0 0.0
    %1528 = vmatprep.subr.mxu0 0.0
    %1529 = vmatpush2.msra.mxu0 0.0
    %1530 = vmatprep.subr.mxu0 0.0
    %1531 = vmatpush2.msra.mxu0 0.0
    %1532 = vmatprep.subr.mxu0 0.0
    %1533 = vmatpush2.msra.mxu0 0.0
    %1534 = vmatprep.subr.mxu0 0.0
    %1535 = vmatpush2.msra.mxu0 0.0
    %1536 = vmatprep.subr.mxu0 0.0
    %1537 = vmatpush2.msra.mxu0 0.0
    %1538 = vmatprep.subr.mxu0 0.0
    %1539 = vmatpush2.msra.mxu0 0.0
    %1540 = vmatprep.mubr.f32.mxu0 0.0
    %1541 = vmatmul.mubr.f32.gmra.mxu0 %v1474
    %v1542 = vpop.f32.mrf.mxu0
    %v1543 = vadd.f32 0.0, %v1542
    %v1544 = vpop.f32.mrf.mxu0
    %1545 = vdwg.mxu0
    %v1546 = vsel %vm459, %v707, 0
    %1548 = vmatprep.subr.mxu0 0.0
    %1549 = vmatpush1.msra.mxu0 0.0
    %1550 = vmatprep.subr.mxu0 0.0
    %1551 = vmatpush1.msra.mxu0 0.0
    %1552 = vmatprep.subr.mxu0 0.0
    %1553 = vmatpush1.msra.mxu0 0.0
    %1554 = vmatprep.subr.mxu0 0.0
    %1555 = vmatpush1.msra.mxu0 0.0
    %1556 = vmatprep.subr.mxu0 0.0
    %1557 = vmatpush1.msra.mxu0 0.0
    %1558 = vmatprep.subr.mxu0 0.0
    %1559 = vmatpush1.msra.mxu0 0.0
    %1560 = vmatprep.subr.mxu0 0.0
    %1561 = vmatpush1.msra.mxu0 0.0
    %1562 = vmatprep.subr.mxu0 0.0
    %1563 = vmatpush1.msra.mxu0 0.0
    %1564 = vmatprep.subr.mxu0 0.0
    %1565 = vmatpush1.msra.mxu0 0.0
    %1566 = vmatprep.subr.mxu0 0.0
    %1567 = vmatpush1.msra.mxu0 0.0
    %1568 = vmatprep.subr.mxu0 0.0
    %1569 = vmatpush1.msra.mxu0 0.0
    %1570 = vmatprep.subr.mxu0 0.0
    %1571 = vmatpush1.msra.mxu0 0.0
    %1572 = vmatprep.subr.mxu0 0.0
    %1573 = vmatpush1.msra.mxu0 0.0
    %1574 = vmatprep.subr.mxu0 0.0
    %1575 = vmatpush1.msra.mxu0 0.0
    %1576 = vmatprep.subr.mxu0 0.0
    %1577 = vmatpush1.msra.mxu0 0.0
    %1578 = vmatprep.subr.mxu0 0.0
    %1579 = vmatpush1.msra.mxu0 %v57
    %1580 = vmatprep.subr.mxu0 0.0
    %1581 = vmatpush2.msra.mxu0 0.0
    %1582 = vmatprep.subr.mxu0 0.0
    %1583 = vmatpush2.msra.mxu0 0.0
    %1584 = vmatprep.subr.mxu0 0.0
    %1585 = vmatpush2.msra.mxu0 0.0
    %1586 = vmatprep.subr.mxu0 0.0
    %1587 = vmatpush2.msra.mxu0 0.0
    %1588 = vmatprep.subr.mxu0 0.0
    %1589 = vmatpush2.msra.mxu0 0.0
    %1590 = vmatprep.subr.mxu0 0.0
    %1591 = vmatpush2.msra.mxu0 0.0
    %1592 = vmatprep.subr.mxu0 0.0
    %1593 = vmatpush2.msra.mxu0 0.0
    %1594 = vmatprep.subr.mxu0 0.0
    %1595 = vmatpush2.msra.mxu0 0.0
    %1596 = vmatprep.subr.mxu0 0.0
    %1597 = vmatpush2.msra.mxu0 0.0
    %1598 = vmatprep.subr.mxu0 0.0
    %1599 = vmatpush2.msra.mxu0 0.0
    %1600 = vmatprep.subr.mxu0 0.0
    %1601 = vmatpush2.msra.mxu0 0.0
    %1602 = vmatprep.subr.mxu0 0.0
    %1603 = vmatpush2.msra.mxu0 0.0
    %1604 = vmatprep.subr.mxu0 0.0
    %1605 = vmatpush2.msra.mxu0 0.0
    %1606 = vmatprep.subr.mxu0 0.0
    %1607 = vmatpush2.msra.mxu0 0.0
    %1608 = vmatprep.subr.mxu0 0.0
    %1609 = vmatpush2.msra.mxu0 0.0
    %1610 = vmatprep.subr.mxu0 0.0
    %1611 = vmatpush2.msra.mxu0 0.0
    %1612 = vmatprep.mubr.f32.mxu0 0.0
    %1613 = vmatmul.mubr.f32.gmra.mxu0 %v1546
    %v1614 = vpop.f32.mrf.mxu0
    %v1615 = vadd.f32 0.0, %v1614
    %v1616 = vpop.f32.mrf.mxu0
    %1617 = vdwg.mxu0
    %v1618 = vsel %vm459, %v711, 0
    %1620 = vmatprep.subr.mxu0 0.0
    %1621 = vmatpush1.msra.mxu0 0.0
    %1622 = vmatprep.subr.mxu0 0.0
    %1623 = vmatpush1.msra.mxu0 0.0
    %1624 = vmatprep.subr.mxu0 0.0
    %1625 = vmatpush1.msra.mxu0 0.0
    %1626 = vmatprep.subr.mxu0 0.0
    %1627 = vmatpush1.msra.mxu0 0.0
    %1628 = vmatprep.subr.mxu0 0.0
    %1629 = vmatpush1.msra.mxu0 0.0
    %1630 = vmatprep.subr.mxu0 0.0
    %1631 = vmatpush1.msra.mxu0 0.0
    %1632 = vmatprep.subr.mxu0 0.0
    %1633 = vmatpush1.msra.mxu0 0.0
    %1634 = vmatprep.subr.mxu0 0.0
    %1635 = vmatpush1.msra.mxu0 0.0
    %1636 = vmatprep.subr.mxu0 0.0
    %1637 = vmatpush1.msra.mxu0 0.0
    %1638 = vmatprep.subr.mxu0 0.0
    %1639 = vmatpush1.msra.mxu0 0.0
    %1640 = vmatprep.subr.mxu0 0.0
    %1641 = vmatpush1.msra.mxu0 0.0
    %1642 = vmatprep.subr.mxu0 0.0
    %1643 = vmatpush1.msra.mxu0 0.0
    %1644 = vmatprep.subr.mxu0 0.0
    %1645 = vmatpush1.msra.mxu0 0.0
    %1646 = vmatprep.subr.mxu0 0.0
    %1647 = vmatpush1.msra.mxu0 0.0
    %1648 = vmatprep.subr.mxu0 0.0
    %1649 = vmatpush1.msra.mxu0 0.0
    %1650 = vmatprep.subr.mxu0 0.0
    %1651 = vmatpush1.msra.mxu0 %v58
    %1652 = vmatprep.subr.mxu0 0.0
    %1653 = vmatpush2.msra.mxu0 0.0
    %1654 = vmatprep.subr.mxu0 0.0
    %1655 = vmatpush2.msra.mxu0 0.0
    %1656 = vmatprep.subr.mxu0 0.0
    %1657 = vmatpush2.msra.mxu0 0.0
    %1658 = vmatprep.subr.mxu0 0.0
    %1659 = vmatpush2.msra.mxu0 0.0
    %1660 = vmatprep.subr.mxu0 0.0
    %1661 = vmatpush2.msra.mxu0 0.0
    %1662 = vmatprep.subr.mxu0 0.0
    %1663 = vmatpush2.msra.mxu0 0.0
    %1664 = vmatprep.subr.mxu0 0.0
    %1665 = vmatpush2.msra.mxu0 0.0
    %1666 = vmatprep.subr.mxu0 0.0
    %1667 = vmatpush2.msra.mxu0 0.0
    %1668 = vmatprep.subr.mxu0 0.0
    %1669 = vmatpush2.msra.mxu0 0.0
    %1670 = vmatprep.subr.mxu0 0.0
    %1671 = vmatpush2.msra.mxu0 0.0
    %1672 = vmatprep.subr.mxu0 0.0
    %1673 = vmatpush2.msra.mxu0 0.0
    %1674 = vmatprep.subr.mxu0 0.0
    %1675 = vmatpush2.msra.mxu0 0.0
    %1676 = vmatprep.subr.mxu0 0.0
    %1677 = vmatpush2.msra.mxu0 0.0
    %1678 = vmatprep.subr.mxu0 0.0
    %1679 = vmatpush2.msra.mxu0 0.0
    %1680 = vmatprep.subr.mxu0 0.0
    %1681 = vmatpush2.msra.mxu0 0.0
    %1682 = vmatprep.subr.mxu0 0.0
    %1683 = vmatpush2.msra.mxu0 0.0
    %1684 = vmatprep.mubr.f32.mxu0 0.0
    %1685 = vmatmul.mubr.f32.gmra.mxu0 %v1618
    %v1686 = vpop.f32.mrf.mxu0
    %v1687 = vadd.f32 0.0, %v1686
    %v1688 = vpop.f32.mrf.mxu0
    %1689 = vdwg.mxu0
    %v1690 = vsel %vm459, %v715, 0
    %1692 = vmatprep.subr.mxu0 0.0
    %1693 = vmatpush1.msra.mxu0 0.0
    %1694 = vmatprep.subr.mxu0 0.0
    %1695 = vmatpush1.msra.mxu0 0.0
    %1696 = vmatprep.subr.mxu0 0.0
    %1697 = vmatpush1.msra.mxu0 0.0
    %1698 = vmatprep.subr.mxu0 0.0
    %1699 = vmatpush1.msra.mxu0 0.0
    %1700 = vmatprep.subr.mxu0 0.0
    %1701 = vmatpush1.msra.mxu0 0.0
    %1702 = vmatprep.subr.mxu0 0.0
    %1703 = vmatpush1.msra.mxu0 0.0
    %1704 = vmatprep.subr.mxu0 0.0
    %1705 = vmatpush1.msra.mxu0 0.0
    %1706 = vmatprep.subr.mxu0 0.0
    %1707 = vmatpush1.msra.mxu0 0.0
    %1708 = vmatprep.subr.mxu0 0.0
    %1709 = vmatpush1.msra.mxu0 0.0
    %1710 = vmatprep.subr.mxu0 0.0
    %1711 = vmatpush1.msra.mxu0 0.0
    %1712 = vmatprep.subr.mxu0 0.0
    %1713 = vmatpush1.msra.mxu0 0.0
    %1714 = vmatprep.subr.mxu0 0.0
    %1715 = vmatpush1.msra.mxu0 0.0
    %1716 = vmatprep.subr.mxu0 0.0
    %1717 = vmatpush1.msra.mxu0 0.0
    %1718 = vmatprep.subr.mxu0 0.0
    %1719 = vmatpush1.msra.mxu0 0.0
    %1720 = vmatprep.subr.mxu0 0.0
    %1721 = vmatpush1.msra.mxu0 0.0
    %1722 = vmatprep.subr.mxu0 0.0
    %1723 = vmatpush1.msra.mxu0 %v59
    %1724 = vmatprep.subr.mxu0 0.0
    %1725 = vmatpush2.msra.mxu0 0.0
    %1726 = vmatprep.subr.mxu0 0.0
    %1727 = vmatpush2.msra.mxu0 0.0
    %1728 = vmatprep.subr.mxu0 0.0
    %1729 = vmatpush2.msra.mxu0 0.0
    %1730 = vmatprep.subr.mxu0 0.0
    %1731 = vmatpush2.msra.mxu0 0.0
    %1732 = vmatprep.subr.mxu0 0.0
    %1733 = vmatpush2.msra.mxu0 0.0
    %1734 = vmatprep.subr.mxu0 0.0
    %1735 = vmatpush2.msra.mxu0 0.0
    %1736 = vmatprep.subr.mxu0 0.0
    %1737 = vmatpush2.msra.mxu0 0.0
    %1738 = vmatprep.subr.mxu0 0.0
    %1739 = vmatpush2.msra.mxu0 0.0
    %1740 = vmatprep.subr.mxu0 0.0
    %1741 = vmatpush2.msra.mxu0 0.0
    %1742 = vmatprep.subr.mxu0 0.0
    %1743 = vmatpush2.msra.mxu0 0.0
    %1744 = vmatprep.subr.mxu0 0.0
    %1745 = vmatpush2.msra.mxu0 0.0
    %1746 = vmatprep.subr.mxu0 0.0
    %1747 = vmatpush2.msra.mxu0 0.0
    %1748 = vmatprep.subr.mxu0 0.0
    %1749 = vmatpush2.msra.mxu0 0.0
    %1750 = vmatprep.subr.mxu0 0.0
    %1751 = vmatpush2.msra.mxu0 0.0
    %1752 = vmatprep.subr.mxu0 0.0
    %1753 = vmatpush2.msra.mxu0 0.0
    %1754 = vmatprep.subr.mxu0 0.0
    %1755 = vmatpush2.msra.mxu0 0.0
    %1756 = vmatprep.mubr.f32.mxu0 0.0
    %1757 = vmatmul.mubr.f32.gmra.mxu0 %v1690
    %v1758 = vpop.f32.mrf.mxu0
    %v1759 = vadd.f32 0.0, %v1758
    %v1760 = vpop.f32.mrf.mxu0
    %1761 = vdwg.mxu0
    %v1762 = vsel %vm459, %v719, 0
    %1764 = vmatprep.subr.mxu0 0.0
    %1765 = vmatpush1.msra.mxu0 0.0
    %1766 = vmatprep.subr.mxu0 0.0
    %1767 = vmatpush1.msra.mxu0 0.0
    %1768 = vmatprep.subr.mxu0 0.0
    %1769 = vmatpush1.msra.mxu0 0.0
    %1770 = vmatprep.subr.mxu0 0.0
    %1771 = vmatpush1.msra.mxu0 0.0
    %1772 = vmatprep.subr.mxu0 0.0
    %1773 = vmatpush1.msra.mxu0 0.0
    %1774 = vmatprep.subr.mxu0 0.0
    %1775 = vmatpush1.msra.mxu0 0.0
    %1776 = vmatprep.subr.mxu0 0.0
    %1777 = vmatpush1.msra.mxu0 0.0
    %1778 = vmatprep.subr.mxu0 0.0
    %1779 = vmatpush1.msra.mxu0 0.0
    %1780 = vmatprep.subr.mxu0 0.0
    %1781 = vmatpush1.msra.mxu0 0.0
    %1782 = vmatprep.subr.mxu0 0.0
    %1783 = vmatpush1.msra.mxu0 0.0
    %1784 = vmatprep.subr.mxu0 0.0
    %1785 = vmatpush1.msra.mxu0 0.0
    %1786 = vmatprep.subr.mxu0 0.0
    %1787 = vmatpush1.msra.mxu0 0.0
    %1788 = vmatprep.subr.mxu0 0.0
    %1789 = vmatpush1.msra.mxu0 0.0
    %1790 = vmatprep.subr.mxu0 0.0
    %1791 = vmatpush1.msra.mxu0 0.0
    %1792 = vmatprep.subr.mxu0 0.0
    %1793 = vmatpush1.msra.mxu0 0.0
    %1794 = vmatprep.subr.mxu0 0.0
    %1795 = vmatpush1.msra.mxu0 %v60
    %1796 = vmatprep.subr.mxu0 0.0
    %1797 = vmatpush2.msra.mxu0 0.0
    %1798 = vmatprep.subr.mxu0 0.0
    %1799 = vmatpush2.msra.mxu0 0.0
    %1800 = vmatprep.subr.mxu0 0.0
    %1801 = vmatpush2.msra.mxu0 0.0
    %1802 = vmatprep.subr.mxu0 0.0
    %1803 = vmatpush2.msra.mxu0 0.0
    %1804 = vmatprep.subr.mxu0 0.0
    %1805 = vmatpush2.msra.mxu0 0.0
    %1806 = vmatprep.subr.mxu0 0.0
    %1807 = vmatpush2.msra.mxu0 0.0
    %1808 = vmatprep.subr.mxu0 0.0
    %1809 = vmatpush2.msra.mxu0 0.0
    %1810 = vmatprep.subr.mxu0 0.0
    %1811 = vmatpush2.msra.mxu0 0.0
    %1812 = vmatprep.subr.mxu0 0.0
    %1813 = vmatpush2.msra.mxu0 0.0
    %1814 = vmatprep.subr.mxu0 0.0
    %1815 = vmatpush2.msra.mxu0 0.0
    %1816 = vmatprep.subr.mxu0 0.0
    %1817 = vmatpush2.msra.mxu0 0.0
    %1818 = vmatprep.subr.mxu0 0.0
    %1819 = vmatpush2.msra.mxu0 0.0
    %1820 = vmatprep.subr.mxu0 0.0
    %1821 = vmatpush2.msra.mxu0 0.0
    %1822 = vmatprep.subr.mxu0 0.0
    %1823 = vmatpush2.msra.mxu0 0.0
    %1824 = vmatprep.subr.mxu0 0.0
    %1825 = vmatpush2.msra.mxu0 0.0
    %1826 = vmatprep.subr.mxu0 0.0
    %1827 = vmatpush2.msra.mxu0 0.0
    %1828 = vmatprep.mubr.f32.mxu0 0.0
    %1829 = vmatmul.mubr.f32.gmra.mxu0 %v1762
    %v1830 = vpop.f32.mrf.mxu0
    %v1831 = vadd.f32 0.0, %v1830
    %v1832 = vpop.f32.mrf.mxu0
    %1833 = vdwg.mxu0
    %v1834 = vsel %vm459, %v723, 0
    %1836 = vmatprep.subr.mxu0 0.0
    %1837 = vmatpush1.msra.mxu0 0.0
    %1838 = vmatprep.subr.mxu0 0.0
    %1839 = vmatpush1.msra.mxu0 0.0
    %1840 = vmatprep.subr.mxu0 0.0
    %1841 = vmatpush1.msra.mxu0 0.0
    %1842 = vmatprep.subr.mxu0 0.0
    %1843 = vmatpush1.msra.mxu0 0.0
    %1844 = vmatprep.subr.mxu0 0.0
    %1845 = vmatpush1.msra.mxu0 0.0
    %1846 = vmatprep.subr.mxu0 0.0
    %1847 = vmatpush1.msra.mxu0 0.0
    %1848 = vmatprep.subr.mxu0 0.0
    %1849 = vmatpush1.msra.mxu0 0.0
    %1850 = vmatprep.subr.mxu0 0.0
    %1851 = vmatpush1.msra.mxu0 0.0
    %1852 = vmatprep.subr.mxu0 0.0
    %1853 = vmatpush1.msra.mxu0 0.0
    %1854 = vmatprep.subr.mxu0 0.0
    %1855 = vmatpush1.msra.mxu0 0.0
    %1856 = vmatprep.subr.mxu0 0.0
    %1857 = vmatpush1.msra.mxu0 0.0
    %1858 = vmatprep.subr.mxu0 0.0
    %1859 = vmatpush1.msra.mxu0 0.0
    %1860 = vmatprep.subr.mxu0 0.0
    %1861 = vmatpush1.msra.mxu0 0.0
    %1862 = vmatprep.subr.mxu0 0.0
    %1863 = vmatpush1.msra.mxu0 0.0
    %1864 = vmatprep.subr.mxu0 0.0
    %1865 = vmatpush1.msra.mxu0 0.0
    %1866 = vmatprep.subr.mxu0 0.0
    %1867 = vmatpush1.msra.mxu0 %v61
    %1868 = vmatprep.subr.mxu0 0.0
    %1869 = vmatpush2.msra.mxu0 0.0
    %1870 = vmatprep.subr.mxu0 0.0
    %1871 = vmatpush2.msra.mxu0 0.0
    %1872 = vmatprep.subr.mxu0 0.0
    %1873 = vmatpush2.msra.mxu0 0.0
    %1874 = vmatprep.subr.mxu0 0.0
    %1875 = vmatpush2.msra.mxu0 0.0
    %1876 = vmatprep.subr.mxu0 0.0
    %1877 = vmatpush2.msra.mxu0 0.0
    %1878 = vmatprep.subr.mxu0 0.0
    %1879 = vmatpush2.msra.mxu0 0.0
    %1880 = vmatprep.subr.mxu0 0.0
    %1881 = vmatpush2.msra.mxu0 0.0
    %1882 = vmatprep.subr.mxu0 0.0
    %1883 = vmatpush2.msra.mxu0 0.0
    %1884 = vmatprep.subr.mxu0 0.0
    %1885 = vmatpush2.msra.mxu0 0.0
    %1886 = vmatprep.subr.mxu0 0.0
    %1887 = vmatpush2.msra.mxu0 0.0
    %1888 = vmatprep.subr.mxu0 0.0
    %1889 = vmatpush2.msra.mxu0 0.0
    %1890 = vmatprep.subr.mxu0 0.0
    %1891 = vmatpush2.msra.mxu0 0.0
    %1892 = vmatprep.subr.mxu0 0.0
    %1893 = vmatpush2.msra.mxu0 0.0
    %1894 = vmatprep.subr.mxu0 0.0
    %1895 = vmatpush2.msra.mxu0 0.0
    %1896 = vmatprep.subr.mxu0 0.0
    %1897 = vmatpush2.msra.mxu0 0.0
    %1898 = vmatprep.subr.mxu0 0.0
    %1899 = vmatpush2.msra.mxu0 0.0
    %1900 = vmatprep.mubr.f32.mxu0 0.0
    %1901 = vmatmul.mubr.f32.gmra.mxu0 %v1834
    %v1902 = vpop.f32.mrf.mxu0
    %v1903 = vadd.f32 0.0, %v1902
    %v1904 = vpop.f32.mrf.mxu0
    %1905 = vdwg.mxu0
    %v1908 = vrot.slane %v752, 1
    %v1909 = vrot.slane %v752, 2
    %v1910 = vrot.slane %v752, 3
    %v1911 = vrot.slane %v752, 4
    %v1912 = vrot.slane %v752, 5
    %v1913 = vrot.slane %v752, 6
    %v1914 = vrot.slane %v752, 7
    %v1915 = vrot.slane %v753, 1
    %v1916 = vrot.slane %v753, 2
    %v1917 = vrot.slane %v753, 3
    %v1918 = vrot.slane %v753, 4
    %v1919 = vrot.slane %v753, 5
    %v1920 = vrot.slane %v753, 6
    %v1921 = vrot.slane %v753, 7
    %v1938 = vmul.f32 %v823, %v752
    %v1939 = vmul.f32 %v895, %v1908
    %v1940 = vmul.f32 %v967, %v1909
    %v1941 = vmul.f32 %v1039, %v1910
    %v1942 = vmul.f32 %v1111, %v1911
    %v1943 = vmul.f32 %v1183, %v1912
    %v1944 = vmul.f32 %v1255, %v1913
    %v1945 = vmul.f32 %v1327, %v1914
    %v1946 = vmul.f32 %v1399, %v753
    %v1947 = vmul.f32 %v1471, %v1915
    %v1948 = vmul.f32 %v1543, %v1916
    %v1949 = vmul.f32 %v1615, %v1917
    %v1950 = vmul.f32 %v1687, %v1918
    %v1951 = vmul.f32 %v1759, %v1919
    %v1952 = vmul.f32 %v1831, %v1920
    %v1953 = vmul.f32 %v1903, %v1921
    %v1970 = vrot.slane %v1939, 7
    %v1971 = vsel %vm436, %v1970, %v1938
    %v1972 = vrot.slane %v1940, 6
    %v1973 = vsel %vm438, %v1972, %v1971
    %v1974 = vrot.slane %v1941, 5
    %v1975 = vsel %vm440, %v1974, %v1973
    %v1976 = vrot.slane %v1942, 4
    %v1977 = vsel %vm442, %v1976, %v1975
    %v1978 = vrot.slane %v1943, 3
    %v1979 = vsel %vm444, %v1978, %v1977
    %v1980 = vrot.slane %v1944, 2
    %v1981 = vsel %vm446, %v1980, %v1979
    %v1982 = vrot.slane %v1945, 1
    %v1983 = vsel %vm448, %v1982, %v1981
    %v1984 = vrot.slane %v1947, 7
    %v1985 = vsel %vm436, %v1984, %v1946
    %v1986 = vrot.slane %v1948, 6
    %v1987 = vsel %vm438, %v1986, %v1985
    %v1988 = vrot.slane %v1949, 5
    %v1989 = vsel %vm440, %v1988, %v1987
    %v1990 = vrot.slane %v1950, 4
    %v1991 = vsel %vm442, %v1990, %v1989
    %v1992 = vrot.slane %v1951, 3
    %v1993 = vsel %vm444, %v1992, %v1991
    %v1994 = vrot.slane %v1952, 2
    %v1995 = vsel %vm446, %v1994, %v1993
    %v1996 = vrot.slane %v1953, 1
    %v1997 = vsel %vm448, %v1996, %v1995
    %2000 = vst.msk [vmem:[#allocation7] sm:$0xff] %vm73, %v1983
    %2001 = vst.msk [vmem:[#allocation7 + $0x8] sm:$0xff] %vm73, %v1997
    // Predicated region
    $region26: #{tpu_custom_call.1} parent=1 // pred_check
      _
    $region27: #{tpu_custom_call.1} parent=1 // pred_check_branch
      %2003 = sbr.rel (0) target = $region29
    $region28: #{tpu_custom_call.1} parent=1 // pred_region
      %s2005 = ssub.s32 256, 256
      %2006 = vsyncadd [#allocation4], %s2005
      %s2007 = sshll.u32 [#allocation7], 4
      %s2008 = int_to_ptr.vmem [resolvable:$true] %s2007
      %2013 = dma.vmem_to_hbm [thread:$0]  %s2008, 256, %s4, [#allocation4], 128, 128, 8
    $region29: #{tpu_custom_call.1} parent=1 // pred_fallthru
      _
    // Predicated region
    $region30: #{tpu_custom_call.1} parent=1 // pred_check
      _
    $region31: #{tpu_custom_call.1} parent=1 // pred_check_branch
      %2015 = sbr.rel (0) target = $region33
    $region32: #{tpu_custom_call.1} parent=1 // pred_region
      %2016 = dma.done [#allocation4], 256
    $region33: #{tpu_custom_call.1} parent=1 // pred_fallthru
      _
    %2017 = vsyncpa [#allocation3], 1
    %2018 = vsyncpa [#allocation6], 1
    %2019 = vsyncpa [#allocation4], 1

</llo_original>
